<compile_context>
chip_gen: v7x
topology: tpu7x:2x2x1
jax: 0.10.0
libtpu: 0.0.40
codegen_flags: <defaults>
</compile_context>

<pallas_src>
import math

import jax
import jax.numpy as jnp
from jax import lax
from jax.experimental import pallas as pl
from jax.experimental.pallas import tpu as pltpu


# ----------------------------- RoPE tables (host-side glue) -----------------
def get_rotary_embedding(seq_len, head_dim, base=10000.0):
    """Matches the PyTorch reference: repeat_interleave(sin/cos, 2, dim=-1)."""
    inv_freq = 1.0 / (base ** (jnp.arange(0, head_dim, 2, dtype=jnp.float32) / head_dim))
    positions = jnp.arange(seq_len, dtype=jnp.float32)
    sinusoid = positions[:, None] * inv_freq[None, :]            # (S, HD/2)
    sin = jnp.repeat(jnp.sin(sinusoid), 2, axis=-1)              # (S, HD)
    cos = jnp.repeat(jnp.cos(sinusoid), 2, axis=-1)              # (S, HD)
    return cos, sin


# --------------------------------- kernel -----------------------------------
def _make_mha_kernel(S, E, NH, HD, scale):
    def kernel(x_ref, wqkv_ref, bqkv_ref, wo_ref, bo_ref, cos_ref, sin_ref, out_ref):
        x = x_ref[0]                                             # (S, E)

        # Fused QKV projection: one lane-dense (S,E)@(E,3E) MXU matmul.
        qkv = (jnp.dot(x, wqkv_ref[...], preferred_element_type=jnp.float32)
               + bqkv_ref[...])                                  # (S, 3E)
        q = qkv[:, :E] * scale        # fold 1/sqrt(head_dim) into q (RoPE is linear)
        k = qkv[:, E:2 * E]
        v = qkv[:, 2 * E:]

        cos = cos_ref[...]                                       # (S, HD)
        sin = sin_ref[...]                                       # sign-folded sin, (S, HD)

        def heads_of(t, with_rope):
            parts = []
            for h in range(NH):
                th = t[:, h * HD:(h + 1) * HD]                   # lane-aligned (S, HD)
                if with_rope:
                    # rotate_half(x) == roll(x, HD//2, lane axis) * [-1..,-1,+1..,+1];
                    # the sign is pre-folded into `sin`, so: x*cos + roll(x)*sin.
                    th = th * cos + pltpu.roll(th, HD // 2, 1) * sin
                parts.append(th)
            return jnp.stack(parts, axis=0)                      # (NH, S, HD)

        qh = heads_of(q, True)
        kh = heads_of(k, True)
        vh = heads_of(v, False)

        # Per-head scores, contracting head_dim of both operands directly
        # (no explicit k.T materialization).
        s = jnp.einsum('hqd,hkd->hqk', qh, kh,
                       preferred_element_type=jnp.float32)       # (NH, S, S)

        # Causal (tril) mask, as in masked_scaled_dot_product_attention.
        q_pos = lax.broadcasted_iota(jnp.int32, (NH, S, S), 1)
        k_pos = lax.broadcasted_iota(jnp.int32, (NH, S, S), 2)
        s = jnp.where(k_pos <= q_pos, s, -1e30)

        # Softmax over keys; normalize with a reciprocal-multiply, not a divide.
        m = jnp.max(s, axis=-1, keepdims=True)
        e = jnp.exp(s - m)
        denom = jnp.sum(e, axis=-1, keepdims=True)
        w = e * pl.reciprocal(denom)      # approx=True is a further (EUP) option

        ctx = jnp.einsum('hqk,hkd->hqd', w, vh,
                         preferred_element_type=jnp.float32)     # (NH, S, HD)
        ctx = jnp.concatenate([ctx[h] for h in range(NH)], axis=-1)  # (S, E)

        # Fused output projection -> lane-dense (S, E) store.
        out_ref[0] = (jnp.dot(ctx, wo_ref[...], preferred_element_type=jnp.float32)
                      + bo_ref[...])
    return kernel


# -------------------------------- wrapper ------------------------------------
def masked_multi_head_attention(hidden_states, params, num_heads):
    """hidden_states: (B, S, E). Returns (B, S, E)."""
    B, S, E = hidden_states.shape
    NH = num_heads
    HD = E // NH
    scale = 1.0 / math.sqrt(HD)

    # Pack Q|K|V weights/biases into one (E, 3E) weight so the projection is a
    # single MXU matmul; weights are already stored as (in_features, out_features).
    wqkv = jnp.concatenate([params["wq"], params["wk"], params["wv"]], axis=1)
    bqkv = jnp.concatenate([params["bq"], params["bk"], params["bv"]])[None, :]
    wo = params["wo"]
    bo = params["bo"][None, :]

    # RoPE tables (module convention). Fold the rotate_half sign into sin.
    cos, sin = get_rotary_embedding(S, HD)                       # (S, HD)
    sign = jnp.concatenate([-jnp.ones((HD // 2,), jnp.float32),
                            jnp.ones((HD // 2,), jnp.float32)])
    sin_signed = sin * sign[None, :]

    rep2 = lambda shape: pl.BlockSpec(shape, lambda b: (0, 0))   # batch-invariant operand

    flops = B * (2 * S * E * (3 * E)          # QKV projection
                 + 4 * NH * S * S * HD        # scores + weights@V
                 + 2 * S * E * E)             # output projection
    bytes_accessed = 4 * (2 * B * S * E + E * 3 * E + 3 * E + E * E + E + 2 * S * HD)
    cost = pl.CostEstimate(flops=flops,
                           transcendentals=B * NH * S * S,
                           bytes_accessed=bytes_accessed)

    kernel = _make_mha_kernel(S, E, NH, HD, scale)
    return pl.pallas_call(
        kernel,
        out_shape=jax.ShapeDtypeStruct((B, S, E), jnp.float32),
        grid_spec=pltpu.PrefetchScalarGridSpec(
            num_scalar_prefetch=0,
            grid=(B,),
            in_specs=[
                pl.BlockSpec((1, S, E), lambda b: (b, 0, 0)),    # hidden states
                rep2((E, 3 * E)), rep2((1, 3 * E)),              # Wqkv, bqkv
                rep2((E, E)), rep2((1, E)),                      # Wo, bo
                rep2((S, HD)), rep2((S, HD)),                    # cos, sign-folded sin
            ],
            out_specs=pl.BlockSpec((1, S, E), lambda b: (b, 0, 0)),
        ),
        compiler_params=pltpu.CompilerParams(dimension_semantics=("parallel",)),
        cost_estimate=cost,
    )(hidden_states, wqkv, bqkv, wo, bo, cos, sin_signed)


# ---------------------------- pure-JAX reference ------------------------------
def _reference(x, params, num_heads):
    B, S, E = x.shape
    HD = E // num_heads
    hi = lax.Precision.HIGHEST
    cos, sin = get_rotary_embedding(S, HD)

    def rotate_half(t):
        t1, t2 = t[..., :HD // 2], t[..., HD // 2:]
        return jnp.concatenate([-t2, t1], axis=-1)

    heads = []
    for h in range(num_heads):
        sl = slice(h * HD, (h + 1) * HD)
        q = jnp.dot(x, params["wq"][:, sl], precision=hi) + params["bq"][sl]
        k = jnp.dot(x, params["wk"][:, sl], precision=hi) + params["bk"][sl]
        v = jnp.dot(x, params["wv"][:, sl], precision=hi) + params["bv"][sl]
        q = q * cos[None] + rotate_half(q) * sin[None]
        k = k * cos[None] + rotate_half(k) * sin[None]
        scores = jnp.einsum('bqd,bkd->bqk', q, k, precision=hi) / math.sqrt(HD)
        mask = jnp.tril(jnp.ones((S, S), dtype=bool))
        scores = jnp.where(mask[None], scores, -jnp.inf)
        w = jax.nn.softmax(scores, axis=-1)
        heads.append(jnp.einsum('bqk,bkd->bqd', w, v, precision=hi))
    ctx = jnp.concatenate(heads, axis=-1)
    return jnp.dot(ctx, params["wo"], precision=hi) + params["bo"]


# ----------------------------------- main --------------------------------------
if __name__ == "__main__":
    # Small shapes, but chosen so every matmul / store is lane-dense:
    # E = 256 (>=128 lanes), num_heads = 2 -> head_dim = 128 per head.
    B, S, E, NH = 2, 16, 256, 2

    key = jax.random.PRNGKey(0)
    kx, kq, kk, kv, kbq, kbk, kbv, ko, kbo = jax.random.split(key, 9)

    x = jax.random.normal(kx, (B, S, E), dtype=jnp.float32)

    # nn.Linear(embed_dim, head_dim) per head; weights stored pre-transposed as
    # (in_features, out_features) and concatenated over heads along the output.
    bound = 1.0 / math.sqrt(E)
    u = lambda kk_, shp: jax.random.uniform(kk_, shp, jnp.float32, -bound, bound)
    params = {
        "wq": u(kq, (E, E)), "bq": u(kbq, (E,)),
        "wk": u(kk, (E, E)), "bk": u(kbk, (E,)),
        "wv": u(kv, (E, E)), "bv": u(kbv, (E,)),
        "wo": u(ko, (E, E)), "bo": u(kbo, (E,)),   # output_linear
    }

    out = masked_multi_head_attention(x, params, NH)
    out = jax.block_until_ready(out)

    ref = _reference(x, params, NH)
    assert out.shape == (B, S, E)
    err = jnp.max(jnp.abs(out - ref))
    assert jnp.allclose(out, ref, atol=1e-3, rtol=1e-3), f"mismatch vs reference, max err={err}"

    print("KERNEL_OK")
</pallas_src>

<mosaic_0001>
module attributes {stable_mosaic.version = 11 : i64} {
  func.func @kernel(%arg0: i32, %arg1: memref<1x16x256xf32, #tpu.memory_space<vmem>>, %arg2: memref<256x768xf32, #tpu.memory_space<vmem>>, %arg3: memref<1x768xf32, #tpu.memory_space<vmem>>, %arg4: memref<256x256xf32, #tpu.memory_space<vmem>>, %arg5: memref<1x256xf32, #tpu.memory_space<vmem>>, %arg6: memref<16x128xf32, #tpu.memory_space<vmem>>, %arg7: memref<16x128xf32, #tpu.memory_space<vmem>>, %arg8: memref<1x16x256xf32, #tpu.memory_space<vmem>>) attributes {dimension_semantics = [#tpu.dimension_semantics<parallel>], iteration_bounds = array<i64: 2>, scalar_prefetch = 0 : i64, scratch_operands = 0 : i64, tpu.core_type = #tpu.core_type<tc>, window_params = [{transform_indices = @transform_0, window_bounds = array<i64: 1, 16, 256>}, {pipeline_mode = #tpu.pipeline_mode<synchronous>, transform_indices = @transform_1, window_bounds = array<i64: 256, 768>}, {pipeline_mode = #tpu.pipeline_mode<synchronous>, transform_indices = @transform_2, window_bounds = array<i64: 1, 768>}, {pipeline_mode = #tpu.pipeline_mode<synchronous>, transform_indices = @transform_3, window_bounds = array<i64: 256, 256>}, {pipeline_mode = #tpu.pipeline_mode<synchronous>, transform_indices = @transform_4, window_bounds = array<i64: 1, 256>}, {pipeline_mode = #tpu.pipeline_mode<synchronous>, transform_indices = @transform_5, window_bounds = array<i64: 16, 128>}, {pipeline_mode = #tpu.pipeline_mode<synchronous>, transform_indices = @transform_6, window_bounds = array<i64: 16, 128>}, {transform_indices = @transform_7, window_bounds = array<i64: 1, 16, 256>}]} {
    %c0 = arith.constant 0 : index
    %c0_0 = arith.constant 0 : index
    %c0_1 = arith.constant 0 : index
    %0 = vector.load %arg1[%c0, %c0_0, %c0_1] : memref<1x16x256xf32, #tpu.memory_space<vmem>>, vector<1x16x256xf32>
    %1 = vector.shape_cast %0 : vector<1x16x256xf32> to vector<16x256xf32>
    %c0_2 = arith.constant 0 : index
    %c0_3 = arith.constant 0 : index
    %2 = vector.load %arg2[%c0_2, %c0_3] : memref<256x768xf32, #tpu.memory_space<vmem>>, vector<256x768xf32>
    %cst = arith.constant dense<0.000000e+00> : vector<16x768xf32>
    %3 = tpu.matmul %1, %2, %cst {dimension_numbers = #tpu.dot_dimension_numbers<[1], [0], [0], [1], [0, 0, 1, 1], [], []>} : vector<16x256xf32>, vector<256x768xf32>, vector<16x768xf32> -> vector<16x768xf32>
    %c0_4 = arith.constant 0 : index
    %c0_5 = arith.constant 0 : index
    %4 = vector.load %arg3[%c0_4, %c0_5] : memref<1x768xf32, #tpu.memory_space<vmem>>, vector<1x768xf32>
    %5 = vector.broadcast %4 : vector<1x768xf32> to vector<16x768xf32>
    %6 = arith.addf %3, %5 : vector<16x768xf32>
    %7 = vector.extract_strided_slice %6 {offsets = [0, 0], sizes = [16, 256], strides = [1, 1]} : vector<16x768xf32> to vector<16x256xf32>
    %cst_6 = arith.constant 0.0883883461 : f32
    %8 = vector.broadcast %cst_6 : f32 to vector<16x256xf32>
    %9 = arith.mulf %7, %8 : vector<16x256xf32>
    %10 = vector.extract_strided_slice %6 {offsets = [0, 256], sizes = [16, 256], strides = [1, 1]} : vector<16x768xf32> to vector<16x256xf32>
    %11 = vector.extract_strided_slice %6 {offsets = [0, 512], sizes = [16, 256], strides = [1, 1]} : vector<16x768xf32> to vector<16x256xf32>
    %c0_7 = arith.constant 0 : index
    %c0_8 = arith.constant 0 : index
    %12 = vector.load %arg6[%c0_7, %c0_8] : memref<16x128xf32, #tpu.memory_space<vmem>>, vector<16x128xf32>
    %c0_9 = arith.constant 0 : index
    %c0_10 = arith.constant 0 : index
    %13 = vector.load %arg7[%c0_9, %c0_10] : memref<16x128xf32, #tpu.memory_space<vmem>>, vector<16x128xf32>
    %14 = vector.extract_strided_slice %9 {offsets = [0, 0], sizes = [16, 128], strides = [1, 1]} : vector<16x256xf32> to vector<16x128xf32>
    %15 = arith.mulf %14, %12 : vector<16x128xf32>
    %c64_i32 = arith.constant 64 : i32
    %16 = tpu.dynamic_rotate %14 by %c64_i32 dim 1 : vector<16x128xf32>, i32 -> vector<16x128xf32>
    %17 = arith.mulf %16, %13 : vector<16x128xf32>
    %18 = arith.addf %15, %17 : vector<16x128xf32>
    %19 = vector.extract_strided_slice %9 {offsets = [0, 128], sizes = [16, 128], strides = [1, 1]} : vector<16x256xf32> to vector<16x128xf32>
    %20 = arith.mulf %19, %12 : vector<16x128xf32>
    %c64_i32_11 = arith.constant 64 : i32
    %21 = tpu.dynamic_rotate %19 by %c64_i32_11 dim 1 : vector<16x128xf32>, i32 -> vector<16x128xf32>
    %22 = arith.mulf %21, %13 : vector<16x128xf32>
    %23 = arith.addf %20, %22 : vector<16x128xf32>
    %24 = vector.shape_cast %18 : vector<16x128xf32> to vector<1x16x128xf32>
    %25 = vector.shape_cast %23 : vector<16x128xf32> to vector<1x16x128xf32>
    %26 = tpu.concatenate %24, %25 in 0 : vector<1x16x128xf32>, vector<1x16x128xf32> -> vector<2x16x128xf32>
    %27 = vector.extract_strided_slice %10 {offsets = [0, 0], sizes = [16, 128], strides = [1, 1]} : vector<16x256xf32> to vector<16x128xf32>
    %28 = arith.mulf %27, %12 : vector<16x128xf32>
    %c64_i32_12 = arith.constant 64 : i32
    %29 = tpu.dynamic_rotate %27 by %c64_i32_12 dim 1 : vector<16x128xf32>, i32 -> vector<16x128xf32>
    %30 = arith.mulf %29, %13 : vector<16x128xf32>
    %31 = arith.addf %28, %30 : vector<16x128xf32>
    %32 = vector.extract_strided_slice %10 {offsets = [0, 128], sizes = [16, 128], strides = [1, 1]} : vector<16x256xf32> to vector<16x128xf32>
    %33 = arith.mulf %32, %12 : vector<16x128xf32>
    %c64_i32_13 = arith.constant 64 : i32
    %34 = tpu.dynamic_rotate %32 by %c64_i32_13 dim 1 : vector<16x128xf32>, i32 -> vector<16x128xf32>
    %35 = arith.mulf %34, %13 : vector<16x128xf32>
    %36 = arith.addf %33, %35 : vector<16x128xf32>
    %37 = vector.shape_cast %31 : vector<16x128xf32> to vector<1x16x128xf32>
    %38 = vector.shape_cast %36 : vector<16x128xf32> to vector<1x16x128xf32>
    %39 = tpu.concatenate %37, %38 in 0 : vector<1x16x128xf32>, vector<1x16x128xf32> -> vector<2x16x128xf32>
    %40 = vector.extract_strided_slice %11 {offsets = [0, 0], sizes = [16, 128], strides = [1, 1]} : vector<16x256xf32> to vector<16x128xf32>
    %41 = vector.extract_strided_slice %11 {offsets = [0, 128], sizes = [16, 128], strides = [1, 1]} : vector<16x256xf32> to vector<16x128xf32>
    %42 = vector.shape_cast %40 : vector<16x128xf32> to vector<1x16x128xf32>
    %43 = vector.shape_cast %41 : vector<16x128xf32> to vector<1x16x128xf32>
    %44 = tpu.concatenate %42, %43 in 0 : vector<1x16x128xf32>, vector<1x16x128xf32> -> vector<2x16x128xf32>
    "tpu.trace_start"() <{level = 10 : i32, message = "hqd,hkd->hqk"}> : () -> ()
    %cst_14 = arith.constant dense<0.000000e+00> : vector<2x16x16xf32>
    %45 = tpu.matmul %26, %39, %cst_14 {dimension_numbers = #tpu.dot_dimension_numbers<[2], [2], [1], [1], [0, 0, 0, 1, 1, 1], [0], [0]>} : vector<2x16x128xf32>, vector<2x16x128xf32>, vector<2x16x16xf32> -> vector<2x16x16xf32>
    "tpu.trace_stop"() : () -> ()
    %46 = tpu.iota {dimensions = array<i32: 1>} : vector<2x16x16xi32>
    %47 = tpu.iota {dimensions = array<i32: 2>} : vector<2x16x16xi32>
    %48 = arith.cmpi sle, %47, %46 : vector<2x16x16xi32>
    %cst_15 = arith.constant -1.000000e+30 : f32
    %49 = vector.broadcast %cst_15 : f32 to vector<2x16x16xf32>
    %50 = arith.select %48, %45, %49 : vector<2x16x16xi1>, vector<2x16x16xf32>
    %cst_16 = arith.constant dense<0xFF800000> : vector<2x16xf32>
    %51 = vector.multi_reduction <maximumf>, %50, %cst_16 [2] : vector<2x16x16xf32> to vector<2x16xf32>
    %52 = vector.shape_cast %51 : vector<2x16xf32> to vector<2x16x1xf32>
    %53 = vector.broadcast %52 : vector<2x16x1xf32> to vector<2x16x16xf32>
    %54 = arith.subf %50, %53 : vector<2x16x16xf32>
    %55 = math.exp %54 : vector<2x16x16xf32>
    %cst_17 = arith.constant dense<0.000000e+00> : vector<2x16xf32>
    %56 = vector.multi_reduction <add>, %55, %cst_17 [2] : vector<2x16x16xf32> to vector<2x16xf32>
    %57 = vector.shape_cast %56 : vector<2x16xf32> to vector<2x16x1xf32>
    %58 = tpu.reciprocal %57 : vector<2x16x1xf32> -> vector<2x16x1xf32>
    %59 = vector.broadcast %58 : vector<2x16x1xf32> to vector<2x16x16xf32>
    %60 = arith.mulf %55, %59 : vector<2x16x16xf32>
    "tpu.trace_start"() <{level = 10 : i32, message = "hqk,hkd->hqd"}> : () -> ()
    %cst_18 = arith.constant dense<0.000000e+00> : vector<2x16x128xf32>
    %61 = tpu.matmul %60, %44, %cst_18 {dimension_numbers = #tpu.dot_dimension_numbers<[2], [1], [1], [2], [0, 0, 0, 1, 1, 2], [0], [0]>} : vector<2x16x16xf32>, vector<2x16x128xf32>, vector<2x16x128xf32> -> vector<2x16x128xf32>
    "tpu.trace_stop"() : () -> ()
    %62 = vector.extract_strided_slice %61 {offsets = [0, 0, 0], sizes = [1, 16, 128], strides = [1, 1, 1]} : vector<2x16x128xf32> to vector<1x16x128xf32>
    %63 = vector.shape_cast %62 : vector<1x16x128xf32> to vector<16x128xf32>
    %64 = vector.extract_strided_slice %61 {offsets = [1, 0, 0], sizes = [1, 16, 128], strides = [1, 1, 1]} : vector<2x16x128xf32> to vector<1x16x128xf32>
    %65 = vector.shape_cast %64 : vector<1x16x128xf32> to vector<16x128xf32>
    %66 = tpu.concatenate %63, %65 in 1 : vector<16x128xf32>, vector<16x128xf32> -> vector<16x256xf32>
    %c0_19 = arith.constant 0 : index
    %c0_20 = arith.constant 0 : index
    %67 = vector.load %arg4[%c0_19, %c0_20] : memref<256x256xf32, #tpu.memory_space<vmem>>, vector<256x256xf32>
    %cst_21 = arith.constant dense<0.000000e+00> : vector<16x256xf32>
    %68 = tpu.matmul %66, %67, %cst_21 {dimension_numbers = #tpu.dot_dimension_numbers<[1], [0], [0], [1], [0, 0, 1, 1], [], []>} : vector<16x256xf32>, vector<256x256xf32>, vector<16x256xf32> -> vector<16x256xf32>
    %c0_22 = arith.constant 0 : index
    %c0_23 = arith.constant 0 : index
    %69 = vector.load %arg5[%c0_22, %c0_23] : memref<1x256xf32, #tpu.memory_space<vmem>>, vector<1x256xf32>
    %70 = vector.broadcast %69 : vector<1x256xf32> to vector<16x256xf32>
    %71 = arith.addf %68, %70 : vector<16x256xf32>
    %c0_24 = arith.constant 0 : index
    %c0_25 = arith.constant 0 : index
    %c0_26 = arith.constant 0 : index
    %72 = vector.load %arg8[%c0_24, %c0_25, %c0_26] : memref<1x16x256xf32, #tpu.memory_space<vmem>>, vector<1x16x256xf32>
    %73 = vector.shape_cast %72 : vector<1x16x256xf32> to vector<16x256xf32>
    %74 = vector.shape_cast %71 : vector<16x256xf32> to vector<1x16x256xf32>
    tpu.vector_store %arg8[%c0_24, %c0_25, %c0_26], %74 {strides = array<i32>} : memref<1x16x256xf32, #tpu.memory_space<vmem>>, vector<1x16x256xf32>,
    return
  }
  func.func @transform_0(%arg0: i32) -> (i32, i32, i32) {
    %c0_i32 = arith.constant 0 : i32
    %c0_i32_0 = arith.constant 0 : i32
    %c0_i32_1 = arith.constant 0 : i32
    return %arg0, %c0_i32, %c0_i32_0 : i32, i32, i32
  }
  func.func @transform_1(%arg0: i32) -> (i32, i32) {
    %c0_i32 = arith.constant 0 : i32
    %c0_i32_0 = arith.constant 0 : i32
    %c0_i32_1 = arith.constant 0 : i32
    return %c0_i32, %c0_i32_0 : i32, i32
  }
  func.func @transform_2(%arg0: i32) -> (i32, i32) {
    %c0_i32 = arith.constant 0 : i32
    %c0_i32_0 = arith.constant 0 : i32
    %c0_i32_1 = arith.constant 0 : i32
    return %c0_i32, %c0_i32_0 : i32, i32
  }
  func.func @transform_3(%arg0: i32) -> (i32, i32) {
    %c0_i32 = arith.constant 0 : i32
    %c0_i32_0 = arith.constant 0 : i32
    %c0_i32_1 = arith.constant 0 : i32
    return %c0_i32, %c0_i32_0 : i32, i32
  }
  func.func @transform_4(%arg0: i32) -> (i32, i32) {
    %c0_i32 = arith.constant 0 : i32
    %c0_i32_0 = arith.constant 0 : i32
    %c0_i32_1 = arith.constant 0 : i32
    return %c0_i32, %c0_i32_0 : i32, i32
  }
  func.func @transform_5(%arg0: i32) -> (i32, i32) {
    %c0_i32 = arith.constant 0 : i32
    %c0_i32_0 = arith.constant 0 : i32
    %c0_i32_1 = arith.constant 0 : i32
    return %c0_i32, %c0_i32_0 : i32, i32
  }
  func.func @transform_6(%arg0: i32) -> (i32, i32) {
    %c0_i32 = arith.constant 0 : i32
    %c0_i32_0 = arith.constant 0 : i32
    %c0_i32_1 = arith.constant 0 : i32
    return %c0_i32, %c0_i32_0 : i32, i32
  }
  func.func @transform_7(%arg0: i32) -> (i32, i32, i32) {
    %c0_i32 = arith.constant 0 : i32
    %c0_i32_0 = arith.constant 0 : i32
    %c0_i32_1 = arith.constant 0 : i32
    return %arg0, %c0_i32, %c0_i32_0 : i32, i32, i32
  }
}

</mosaic_0001>

<llo_original>
// kernel: tpu_custom_call.1
$region0: #{tpu_custom_call.1}
  #allocation0 [shape = 'u32[]', space=smem, size = 0x4, offset = 0x4, fixed_abs, tag = 'smem constant byte address 0x4 - core index']
  #allocation1 [shape = 'u32[144,128]{1,0:T(1,128)}', space=vmem, size = 0x12000, scoped, tag = 'internal scratch']
  %s0 = inlined_call_operand.hbm [shape: f32[2,16,256], index: 0, kind: input, shape index: {}]
  %s1 = inlined_call_operand.hbm [shape: f32[256,768], index: 1, kind: input, shape index: {}]
  %s2 = inlined_call_operand.hbm [shape: f32[1,768], index: 2, kind: input, shape index: {}]
  %s3 = inlined_call_operand.hbm [shape: f32[256,256], index: 3, kind: input, shape index: {}]
  %s4 = inlined_call_operand.vmem [shape: f32[1,256], index: 4, kind: input, shape index: {}]
  %s5 = inlined_call_operand.vmem [shape: f32[16,128], index: 5, kind: input, shape index: {}]
  %s6 = inlined_call_operand.hbm [shape: f32[16,128], index: 6, kind: input, shape index: {}]
  %s7 = inlined_call_operand.hbm [shape: f32[2,16,256], index: 7, kind: output, shape index: {}]
  %s8 = sld [smem:[#allocation0]]
  $region81: #{tpu_custom_call.1} parent=0
    _
  %s10 = ssub.s32 1, %s8
  %s11 = scalar_select 0, %s10, %s8
  $region1: #{tpu_custom_call.1} parent=0
    #allocation2 [shape = 'u8[32768]{0}', space=vmem, size = 0x8000, scoped, tag = 'input window, operand 0']
    #allocation3 [shape = 's32[2]{0}', space=sflag, size = 0x8, scoped, tag = 'scoped memory for tpu_custom_call.1']
    #allocation4 [shape = 's32[2]{0}', space=sflag, size = 0x8, scoped, tag = 'scoped memory for tpu_custom_call.1']
    #allocation5 [shape = 'u8[786432]{0}', space=vmem, size = 0xc0000, scoped, tag = 'input window, operand 1, single buffered']
    #allocation6 [shape = 's32[1]{0}', space=sflag, size = 0x4, scoped, tag = 'scoped memory for tpu_custom_call.1']
    #allocation7 [shape = 'u8[3072]{0}', space=vmem, size = 0xc00, scoped, tag = 'input window, operand 2, single buffered']
    #allocation8 [shape = 'u8[262144]{0}', space=vmem, size = 0x40000, scoped, tag = 'input window, operand 3, single buffered']
    #allocation9 [shape = 's32[1]{0}', space=sflag, size = 0x4, scoped, tag = 'scoped memory for tpu_custom_call.1']
    #allocation10 [shape = 'u8[8192]{0}', space=vmem, size = 0x2000, scoped, tag = 'input window, operand 6, single buffered']
    #allocation11 [shape = 'u8[32768]{0}', space=vmem, size = 0x8000, scoped, tag = 'output window, operand 0']
    %12 = vsyncpa [#allocation3], 0
    %s13 = scalar_lea.sflag [#allocation3], 1
    %14 = vsyncpa %s13, 0
    %15 = vsyncpa [#allocation6], 0
    %16 = vsyncpa [#allocation9], 0
    %17 = vsyncpa [#allocation4], 0
    %s18 = scalar_lea.sflag [#allocation4], 1
    %19 = vsyncpa %s18, 0
    loop: start=0, step=1, limit=4
    $region2: #{tpu_custom_call.1} parent=1 // loop_pre_header
      _
    $region3: #{tpu_custom_call.1} parent=1 // loop_header
      %s21 = sphi 0, %s25
      %p22 = scmp.ge.s32.totalorder %s21, 4
      %s31 = sphi 0, %s33
      %s34 = sphi 0, %s31
      %s35 = sphi 0, %s34
      %s51 = sphi 0, %s35
      %s55 = sphi 0, %s55
      %s57 = sphi 0, %s55
      %s58 = sphi 0, %s57
      %s72 = sphi 0, %s58
      %s76 = sphi 0, %s76
      %s78 = sphi 0, %s76
      %s79 = sphi 0, %s78
      %s93 = sphi 0, %s79
      %s97 = sphi 0, %s97
      %s99 = sphi 0, %s97
      %s100 = sphi 0, %s99
      %s114 = sphi 0, %s100
      %s118 = sphi 0, %s118
      %s120 = sphi 0, %s118
      %s121 = sphi 0, %s120
      %s135 = sphi 0, %s121
      %s139 = sphi 0, %s139
      %s141 = sphi 0, %s139
      %s142 = sphi 0, %s141
      %s156 = sphi 0, %s142
      %s160 = sphi 0, %s160
      %s162 = sphi 0, %s160
      %s163 = sphi 0, %s162
      %s177 = sphi 0, %s163
      %s183 = sphi 0, %s185
      %s186 = sphi 0, %s183
      %s187 = sphi 0, %s186
      %s203 = sphi 0, %s187
    $region4: #{tpu_custom_call.1} parent=1 // loop_header_branch
      %24 = sbr.rel (%p22) target = $region8
    $region5: #{tpu_custom_call.1} parent=1 // loop_body
      %s26 = ssub.s32 %s21, 1
      %s27 = ssub.s32 %s21, 2
      %s28 = sadd.s32 %s21, 1
      %s29 = ssub.s32 %s21, %s28
      %p30 = scmp.eq.s32.totalorder %s29, 0
      %s32 = sadd.s32 %s31, 1
      %s33 = scalar_select %p30, %s31, %s32
      %p36 = pneg %p30
      %p37 = scmp.eq.s32.totalorder %s21, 1
      %p38 = por %p36, %p37
      %p39 = scmp.ne.s32.totalorder %s31, %s34
      %p40 = scmp.eq.s32.totalorder %s21, 0
      %p41 = por %p39, %p40
      %p42 = scmp.ne.s32.totalorder %s31, %s34
      %p43 = scmp.eq.s32.totalorder %s26, 1
      %p44 = por %p42, %p43
      %p45 = scmp.ne.s32.totalorder %s34, %s35
      %p46 = scmp.eq.s32.totalorder %s26, 0
      %p47 = por %p45, %p46
      %p48 = scmp.ne.s32.totalorder %s34, %s35
      %p49 = scmp.eq.s32.totalorder %s27, 1
      %p50 = por %p48, %p49
      %p52 = scmp.ne.s32.totalorder %s35, %s51
      %p53 = scmp.eq.s32.totalorder %s27, 0
      %p54 = por %p52, %p53
      %s56 = sadd.s32 %s55, 1
      %p59 = scmp.eq.s32.totalorder %s21, 1
      %p60 = scmp.ne.s32.totalorder %s55, %s57
      %p61 = scmp.eq.s32.totalorder %s21, 0
      %p62 = por %p60, %p61
      %p63 = scmp.ne.s32.totalorder %s55, %s57
      %p64 = scmp.eq.s32.totalorder %s26, 1
      %p65 = por %p63, %p64
      %p66 = scmp.ne.s32.totalorder %s57, %s58
      %p67 = scmp.eq.s32.totalorder %s26, 0
      %p68 = por %p66, %p67
      %p69 = scmp.ne.s32.totalorder %s57, %s58
      %p70 = scmp.eq.s32.totalorder %s27, 1
      %p71 = por %p69, %p70
      %p73 = scmp.ne.s32.totalorder %s58, %s72
      %p74 = scmp.eq.s32.totalorder %s27, 0
      %p75 = por %p73, %p74
      %s77 = sadd.s32 %s76, 1
      %p80 = scmp.eq.s32.totalorder %s21, 1
      %p81 = scmp.ne.s32.totalorder %s76, %s78
      %p82 = scmp.eq.s32.totalorder %s21, 0
      %p83 = por %p81, %p82
      %p84 = scmp.ne.s32.totalorder %s76, %s78
      %p85 = scmp.eq.s32.totalorder %s26, 1
      %p86 = por %p84, %p85
      %p87 = scmp.ne.s32.totalorder %s78, %s79
      %p88 = scmp.eq.s32.totalorder %s26, 0
      %p89 = por %p87, %p88
      %p90 = scmp.ne.s32.totalorder %s78, %s79
      %p91 = scmp.eq.s32.totalorder %s27, 1
      %p92 = por %p90, %p91
      %p94 = scmp.ne.s32.totalorder %s79, %s93
      %p95 = scmp.eq.s32.totalorder %s27, 0
      %p96 = por %p94, %p95
      %s98 = sadd.s32 %s97, 1
      %p101 = scmp.eq.s32.totalorder %s21, 1
      %p102 = scmp.ne.s32.totalorder %s97, %s99
      %p103 = scmp.eq.s32.totalorder %s21, 0
      %p104 = por %p102, %p103
      %p105 = scmp.ne.s32.totalorder %s97, %s99
      %p106 = scmp.eq.s32.totalorder %s26, 1
      %p107 = por %p105, %p106
      %p108 = scmp.ne.s32.totalorder %s99, %s100
      %p109 = scmp.eq.s32.totalorder %s26, 0
      %p110 = por %p108, %p109
      %p111 = scmp.ne.s32.totalorder %s99, %s100
      %p112 = scmp.eq.s32.totalorder %s27, 1
      %p113 = por %p111, %p112
      %p115 = scmp.ne.s32.totalorder %s100, %s114
      %p116 = scmp.eq.s32.totalorder %s27, 0
      %p117 = por %p115, %p116
      %s119 = sadd.s32 %s118, 1
      %p122 = scmp.eq.s32.totalorder %s21, 1
      %p123 = scmp.ne.s32.totalorder %s118, %s120
      %p124 = scmp.eq.s32.totalorder %s21, 0
      %p125 = por %p123, %p124
      %p126 = scmp.ne.s32.totalorder %s118, %s120
      %p127 = scmp.eq.s32.totalorder %s26, 1
      %p128 = por %p126, %p127
      %p129 = scmp.ne.s32.totalorder %s120, %s121
      %p130 = scmp.eq.s32.totalorder %s26, 0
      %p131 = por %p129, %p130
      %p132 = scmp.ne.s32.totalorder %s120, %s121
      %p133 = scmp.eq.s32.totalorder %s27, 1
      %p134 = por %p132, %p133
      %p136 = scmp.ne.s32.totalorder %s121, %s135
      %p137 = scmp.eq.s32.totalorder %s27, 0
      %p138 = por %p136, %p137
      %s140 = sadd.s32 %s139, 1
      %p143 = scmp.eq.s32.totalorder %s21, 1
      %p144 = scmp.ne.s32.totalorder %s139, %s141
      %p145 = scmp.eq.s32.totalorder %s21, 0
      %p146 = por %p144, %p145
      %p147 = scmp.ne.s32.totalorder %s139, %s141
      %p148 = scmp.eq.s32.totalorder %s26, 1
      %p149 = por %p147, %p148
      %p150 = scmp.ne.s32.totalorder %s141, %s142
      %p151 = scmp.eq.s32.totalorder %s26, 0
      %p152 = por %p150, %p151
      %p153 = scmp.ne.s32.totalorder %s141, %s142
      %p154 = scmp.eq.s32.totalorder %s27, 1
      %p155 = por %p153, %p154
      %p157 = scmp.ne.s32.totalorder %s142, %s156
      %p158 = scmp.eq.s32.totalorder %s27, 0
      %p159 = por %p157, %p158
      %s161 = sadd.s32 %s160, 1
      %p164 = scmp.eq.s32.totalorder %s21, 1
      %p165 = scmp.ne.s32.totalorder %s160, %s162
      %p166 = scmp.eq.s32.totalorder %s21, 0
      %p167 = por %p165, %p166
      %p168 = scmp.ne.s32.totalorder %s160, %s162
      %p169 = scmp.eq.s32.totalorder %s26, 1
      %p170 = por %p168, %p169
      %p171 = scmp.ne.s32.totalorder %s162, %s163
      %p172 = scmp.eq.s32.totalorder %s26, 0
      %p173 = por %p171, %p172
      %p174 = scmp.ne.s32.totalorder %s162, %s163
      %p175 = scmp.eq.s32.totalorder %s27, 1
      %p176 = por %p174, %p175
      %p178 = scmp.ne.s32.totalorder %s163, %s177
      %p179 = scmp.eq.s32.totalorder %s27, 0
      %p180 = por %p178, %p179
      %s181 = ssub.s32 %s21, %s28
      %p182 = scmp.eq.s32.totalorder %s181, 0
      %s184 = sadd.s32 %s183, 1
      %s185 = scalar_select %p182, %s183, %s184
      %p188 = pneg %p182
      %p189 = scmp.eq.s32.totalorder %s21, 1
      %p190 = por %p188, %p189
      %p191 = scmp.ne.s32.totalorder %s183, %s186
      %p192 = scmp.eq.s32.totalorder %s21, 0
      %p193 = por %p191, %p192
      %p194 = scmp.ne.s32.totalorder %s183, %s186
      %p195 = scmp.eq.s32.totalorder %s26, 1
      %p196 = por %p194, %p195
      %p197 = scmp.ne.s32.totalorder %s186, %s187
      %p198 = scmp.eq.s32.totalorder %s26, 0
      %p199 = por %p197, %p198
      %p200 = scmp.ne.s32.totalorder %s186, %s187
      %p201 = scmp.eq.s32.totalorder %s27, 1
      %p202 = por %p200, %p201
      %p204 = scmp.ne.s32.totalorder %s187, %s203
      %p205 = scmp.eq.s32.totalorder %s27, 0
      %p206 = por %p204, %p205
      %p207 = scmp.le.s32.totalorder 1, %s21
      %p208 = scmp.lt.s32.totalorder %s21, 3
      %p209 = pnand %p207, %p208
      %p210 = pneg %p209
      // Predicated region
      $region9: #{tpu_custom_call.1} parent=5 // pred_check
        _
      $region10: #{tpu_custom_call.1} parent=5 // pred_check_branch
        %212 = sbr.rel (%p209) target = $region12
      $region11: #{tpu_custom_call.1} parent=5 // pred_region
        %s213 = ssub.s32 %s21, 1
        // Predicated region
        $region13: #{tpu_custom_call.1} parent=11 // pred_check
          %p214 = pneg %p68
        $region14: #{tpu_custom_call.1} parent=11 // pred_check_branch
          %216 = sbr.rel (%p214) target = $region16
        $region15: #{tpu_custom_call.1} parent=11 // pred_region
          %s218 = ssub.s32 24576, 24576
          %219 = vsyncadd [#allocation6], %s218
          %s220 = sshll.u32 [#allocation5], 4
          %s221 = int_to_ptr.vmem [resolvable:$true] %s220
          %226 = dma.hbm_to_vmem [thread:$0]  %s1, 24576, %s221, [#allocation6], 768, 768, 48
        $region16: #{tpu_custom_call.1} parent=11 // pred_fallthru
          _
        // Predicated region
        $region17: #{tpu_custom_call.1} parent=11 // pred_check
          %p227 = pneg %p89
        $region18: #{tpu_custom_call.1} parent=11 // pred_check_branch
          %229 = sbr.rel (%p227) target = $region20
        $region19: #{tpu_custom_call.1} parent=11 // pred_region
          %s231 = ssub.s32 96, 96
          %232 = vsyncadd [#allocation6], %s231
          %s234 = sshll.u32 [#allocation7], 4
          %s235 = int_to_ptr.vmem [resolvable:$true] %s234
          %237 = dma.hbm_to_vmem [thread:$0]  %s2, 96, %s235, [#allocation6]
        $region20: #{tpu_custom_call.1} parent=11 // pred_fallthru
          _
        // Predicated region
        $region21: #{tpu_custom_call.1} parent=11 // pred_check
          %p238 = pneg %p110
        $region22: #{tpu_custom_call.1} parent=11 // pred_check_branch
          %240 = sbr.rel (%p238) target = $region24
        $region23: #{tpu_custom_call.1} parent=11 // pred_region
          %s242 = ssub.s32 8192, 8192
          %243 = vsyncadd [#allocation9], %s242
          %s244 = sshll.u32 [#allocation8], 4
          %s245 = int_to_ptr.vmem [resolvable:$true] %s244
          %250 = dma.hbm_to_vmem [thread:$0]  %s3, 8192, %s245, [#allocation9], 256, 256, 16
        $region24: #{tpu_custom_call.1} parent=11 // pred_fallthru
          _
        // Predicated region
        $region25: #{tpu_custom_call.1} parent=11 // pred_check
          %p251 = pneg %p131
        $region26: #{tpu_custom_call.1} parent=11 // pred_check_branch
          %253 = sbr.rel (%p251) target = $region28
        $region27: #{tpu_custom_call.1} parent=11 // pred_region
          _
        $region28: #{tpu_custom_call.1} parent=11 // pred_fallthru
          _
        // Predicated region
        $region29: #{tpu_custom_call.1} parent=11 // pred_check
          %p254 = pneg %p152
        $region30: #{tpu_custom_call.1} parent=11 // pred_check_branch
          %256 = sbr.rel (%p254) target = $region32
        $region31: #{tpu_custom_call.1} parent=11 // pred_region
          _
        $region32: #{tpu_custom_call.1} parent=11 // pred_fallthru
          _
        // Predicated region
        $region33: #{tpu_custom_call.1} parent=11 // pred_check
          %p257 = pneg %p173
        $region34: #{tpu_custom_call.1} parent=11 // pred_check_branch
          %259 = sbr.rel (%p257) target = $region36
        $region35: #{tpu_custom_call.1} parent=11 // pred_region
          %s261 = ssub.s32 256, 256
          %262 = vsyncadd [#allocation9], %s261
          %s263 = sshll.u32 [#allocation10], 4
          %s264 = int_to_ptr.vmem [resolvable:$true] %s263
          %269 = dma.hbm_to_vmem [thread:$0]  %s6, 256, %s264, [#allocation9], 128, 128, 8
        $region36: #{tpu_custom_call.1} parent=11 // pred_fallthru
          _
      $region12: #{tpu_custom_call.1} parent=5 // pred_fallthru
        _
      %p270 = scmp.lt.s32.totalorder %s21, 2
      // Predicated region
      $region37: #{tpu_custom_call.1} parent=5 // pred_check
        %p271 = pneg %p270
      $region38: #{tpu_custom_call.1} parent=5 // pred_check_branch
        %273 = sbr.rel (%p271) target = $region40
      $region39: #{tpu_custom_call.1} parent=5 // pred_region
        // Predicated region
        $region41: #{tpu_custom_call.1} parent=39 // pred_check
          %p274 = pneg %p41
        $region42: #{tpu_custom_call.1} parent=39 // pred_check_branch
          %276 = sbr.rel (%p274) target = $region44
        $region43: #{tpu_custom_call.1} parent=39 // pred_region
          %s277 = sand.u32 %s31, 1
          %s278 = scalar_lea.sflag [#allocation3], %s277
          %s279 = sand.u32 %s31, 1
          %s280 = smul.addr %s279, 32
          %s281 = scalar_lea.vmem [#allocation2], %s280
          %s283 = ssub.s32 512, 512
          %284 = vsyncadd %s278, %s283
          %s285 = smul.addr %s21, 4
          %s286 = smul.addr %s285, 128
          %s287 = scalar_lea.hbm %s0, %s286
          %s288 = sshll.u32 %s281, 4
          %s289 = int_to_ptr.vmem [resolvable:$true] %s288
          %294 = dma.hbm_to_vmem [thread:$0]  %s287, 512, %s289, %s278, 256, 256, 16
        $region44: #{tpu_custom_call.1} parent=39 // pred_fallthru
          _
      $region40: #{tpu_custom_call.1} parent=5 // pred_fallthru
        _
      %p295 = scmp.le.s32.totalorder 1, %s21
      %p296 = scmp.lt.s32.totalorder %s21, 3
      %p297 = pnand %p295, %p296
      %p298 = pneg %p297
      // Predicated region
      $region45: #{tpu_custom_call.1} parent=5 // pred_check
        _
      $region46: #{tpu_custom_call.1} parent=5 // pred_check_branch
        %300 = sbr.rel (%p297) target = $region48
      $region47: #{tpu_custom_call.1} parent=5 // pred_region
        %s301 = ssub.s32 %s21, 1
        %s302 = sand.u32 %s34, 1
        %s303 = scalar_lea.sflag [#allocation3], %s302
        %s304 = sand.u32 %s34, 1
        %s305 = smul.addr %s304, 32
        %s306 = scalar_lea.vmem [#allocation2], %s305
        // Predicated region
        $region49: #{tpu_custom_call.1} parent=47 // pred_check
          %p307 = pneg %p47
        $region50: #{tpu_custom_call.1} parent=47 // pred_check_branch
          %309 = sbr.rel (%p307) target = $region52
        $region51: #{tpu_custom_call.1} parent=47 // pred_region
          %310 = dma.done %s303, 512
        $region52: #{tpu_custom_call.1} parent=47 // pred_fallthru
          _
        // Predicated region
        $region53: #{tpu_custom_call.1} parent=47 // pred_check
          %p311 = pneg %p68
        $region54: #{tpu_custom_call.1} parent=47 // pred_check_branch
          %313 = sbr.rel (%p311) target = $region56
        $region55: #{tpu_custom_call.1} parent=47 // pred_region
          %314 = dma.done [#allocation6], 24576
        $region56: #{tpu_custom_call.1} parent=47 // pred_fallthru
          _
        // Predicated region
        $region57: #{tpu_custom_call.1} parent=47 // pred_check
          %p315 = pneg %p89
        $region58: #{tpu_custom_call.1} parent=47 // pred_check_branch
          %317 = sbr.rel (%p315) target = $region60
        $region59: #{tpu_custom_call.1} parent=47 // pred_region
          %318 = dma.done [#allocation6], 96
        $region60: #{tpu_custom_call.1} parent=47 // pred_fallthru
          _
        // Predicated region
        $region61: #{tpu_custom_call.1} parent=47 // pred_check
          %p319 = pneg %p110
        $region62: #{tpu_custom_call.1} parent=47 // pred_check_branch
          %321 = sbr.rel (%p319) target = $region64
        $region63: #{tpu_custom_call.1} parent=47 // pred_region
          %322 = dma.done [#allocation9], 8192
        $region64: #{tpu_custom_call.1} parent=47 // pred_fallthru
          _
        // Predicated region
        $region65: #{tpu_custom_call.1} parent=47 // pred_check
          %p323 = pneg %p173
        $region66: #{tpu_custom_call.1} parent=47 // pred_check_branch
          %325 = sbr.rel (%p323) target = $region68
        $region67: #{tpu_custom_call.1} parent=47 // pred_region
          %326 = dma.done [#allocation9], 256
        $region68: #{tpu_custom_call.1} parent=47 // pred_fallthru
          _
        %s327 = sand.u32 %s34, 1
        %s328 = scalar_lea.sflag [#allocation3], %s327
        %s329 = sand.u32 %s34, 1
        %s330 = smul.addr %s329, 32
        %s331 = scalar_lea.vmem [#allocation2], %s330
        %p332 = pneg %p47
        %p333 = pneg %p44
        %p334 = pneg %p68
        %p335 = pneg %p65
        %p336 = pneg %p89
        %p337 = pneg %p86
        %p338 = pneg %p110
        %p339 = pneg %p107
        %p340 = pneg %p131
        %p341 = pneg %p128
        %p342 = pneg %p152
        %p343 = pneg %p149
        %p344 = pneg %p173
        %p345 = pneg %p170
        %p346 = pneg %p199
        %p347 = pneg %p196
        %s348 = sand.u32 %s186, 1
        %s349 = scalar_lea.sflag [#allocation4], %s348
        %s350 = sand.u32 %s186, 1
        %s351 = smul.addr %s350, 32
        %s352 = scalar_lea.vmem [#allocation11], %s351
        %v353 = vld [vmem:[%s306] sm:$0xff]
        %v354 = vld [vmem:[%s306 + $0x8] sm:$0xff]
        %v355 = vld [vmem:[%s306 + $0x10] sm:$0xff]
        %v356 = vld [vmem:[%s306 + $0x18] sm:$0xff]
        %v357 = vld [vmem:[#allocation5] sm:$0xff]
        %v358 = vld [vmem:[#allocation5 + $0x8] sm:$0xff]
        %v359 = vld [vmem:[#allocation5 + $0x10] sm:$0xff]
        %v360 = vld [vmem:[#allocation5 + $0x18] sm:$0xff]
        %v361 = vld [vmem:[#allocation5 + $0x20] sm:$0xff]
        %v362 = vld [vmem:[#allocation5 + $0x28] sm:$0xff]
        %v363 = vld [vmem:[#allocation5 + $0x30] sm:$0xff]
        %v364 = vld [vmem:[#allocation5 + $0x38] sm:$0xff]
        %v365 = vld [vmem:[#allocation5 + $0x40] sm:$0xff]
        %v366 = vld [vmem:[#allocation5 + $0x48] sm:$0xff]
        %v367 = vld [vmem:[#allocation5 + $0x50] sm:$0xff]
        %v368 = vld [vmem:[#allocation5 + $0x58] sm:$0xff]
        %v369 = vld [vmem:[#allocation5 + $0x60] sm:$0xff]
        %v370 = vld [vmem:[#allocation5 + $0x68] sm:$0xff]
        %v371 = vld [vmem:[#allocation5 + $0x70] sm:$0xff]
        %v372 = vld [vmem:[#allocation5 + $0x78] sm:$0xff]
        %v373 = vld [vmem:[#allocation5 + $0x80] sm:$0xff]
        %v374 = vld [vmem:[#allocation5 + $0x88] sm:$0xff]
        %v375 = vld [vmem:[#allocation5 + $0x90] sm:$0xff]
        %v376 = vld [vmem:[#allocation5 + $0x98] sm:$0xff]
        %v377 = vld [vmem:[#allocation5 + $0xa0] sm:$0xff]
        %v378 = vld [vmem:[#allocation5 + $0xa8] sm:$0xff]
        %v379 = vld [vmem:[#allocation5 + $0xb0] sm:$0xff]
        %v380 = vld [vmem:[#allocation5 + $0xb8] sm:$0xff]
        %v381 = vld [vmem:[#allocation5 + $0xc0] sm:$0xff]
        %v382 = vld [vmem:[#allocation5 + $0xc8] sm:$0xff]
        %v383 = vld [vmem:[#allocation5 + $0xd0] sm:$0xff]
        %v384 = vld [vmem:[#allocation5 + $0xd8] sm:$0xff]
        %v385 = vld [vmem:[#allocation5 + $0xe0] sm:$0xff]
        %v386 = vld [vmem:[#allocation5 + $0xe8] sm:$0xff]
        %v387 = vld [vmem:[#allocation5 + $0xf0] sm:$0xff]
        %v388 = vld [vmem:[#allocation5 + $0xf8] sm:$0xff]
        %v389 = vld [vmem:[#allocation5 + $0x100] sm:$0xff]
        %v390 = vld [vmem:[#allocation5 + $0x108] sm:$0xff]
        %v391 = vld [vmem:[#allocation5 + $0x110] sm:$0xff]
        %v392 = vld [vmem:[#allocation5 + $0x118] sm:$0xff]
        %v393 = vld [vmem:[#allocation5 + $0x120] sm:$0xff]
        %v394 = vld [vmem:[#allocation5 + $0x128] sm:$0xff]
        %v395 = vld [vmem:[#allocation5 + $0x130] sm:$0xff]
        %v396 = vld [vmem:[#allocation5 + $0x138] sm:$0xff]
        %v397 = vld [vmem:[#allocation5 + $0x140] sm:$0xff]
        %v398 = vld [vmem:[#allocation5 + $0x148] sm:$0xff]
        %v399 = vld [vmem:[#allocation5 + $0x150] sm:$0xff]
        %v400 = vld [vmem:[#allocation5 + $0x158] sm:$0xff]
        %v401 = vld [vmem:[#allocation5 + $0x160] sm:$0xff]
        %v402 = vld [vmem:[#allocation5 + $0x168] sm:$0xff]
        %v403 = vld [vmem:[#allocation5 + $0x170] sm:$0xff]
        %v404 = vld [vmem:[#allocation5 + $0x178] sm:$0xff]
        %v405 = vld [vmem:[#allocation5 + $0x180] sm:$0xff]
        %v406 = vld [vmem:[#allocation5 + $0x188] sm:$0xff]
        %v407 = vld [vmem:[#allocation5 + $0x190] sm:$0xff]
        %v408 = vld [vmem:[#allocation5 + $0x198] sm:$0xff]
        %v409 = vld [vmem:[#allocation5 + $0x1a0] sm:$0xff]
        %v410 = vld [vmem:[#allocation5 + $0x1a8] sm:$0xff]
        %v411 = vld [vmem:[#allocation5 + $0x1b0] sm:$0xff]
        %v412 = vld [vmem:[#allocation5 + $0x1b8] sm:$0xff]
        %v413 = vld [vmem:[#allocation5 + $0x1c0] sm:$0xff]
        %v414 = vld [vmem:[#allocation5 + $0x1c8] sm:$0xff]
        %v415 = vld [vmem:[#allocation5 + $0x1d0] sm:$0xff]
        %v416 = vld [vmem:[#allocation5 + $0x1d8] sm:$0xff]
        %v417 = vld [vmem:[#allocation5 + $0x1e0] sm:$0xff]
        %v418 = vld [vmem:[#allocation5 + $0x1e8] sm:$0xff]
        %v419 = vld [vmem:[#allocation5 + $0x1f0] sm:$0xff]
        %v420 = vld [vmem:[#allocation5 + $0x1f8] sm:$0xff]
        %v421 = vld [vmem:[#allocation5 + $0x200] sm:$0xff]
        %v422 = vld [vmem:[#allocation5 + $0x208] sm:$0xff]
        %v423 = vld [vmem:[#allocation5 + $0x210] sm:$0xff]
        %v424 = vld [vmem:[#allocation5 + $0x218] sm:$0xff]
        %v425 = vld [vmem:[#allocation5 + $0x220] sm:$0xff]
        %v426 = vld [vmem:[#allocation5 + $0x228] sm:$0xff]
        %v427 = vld [vmem:[#allocation5 + $0x230] sm:$0xff]
        %v428 = vld [vmem:[#allocation5 + $0x238] sm:$0xff]
        %v429 = vld [vmem:[#allocation5 + $0x240] sm:$0xff]
        %v430 = vld [vmem:[#allocation5 + $0x248] sm:$0xff]
        %v431 = vld [vmem:[#allocation5 + $0x250] sm:$0xff]
        %v432 = vld [vmem:[#allocation5 + $0x258] sm:$0xff]
        %v433 = vld [vmem:[#allocation5 + $0x260] sm:$0xff]
        %v434 = vld [vmem:[#allocation5 + $0x268] sm:$0xff]
        %v435 = vld [vmem:[#allocation5 + $0x270] sm:$0xff]
        %v436 = vld [vmem:[#allocation5 + $0x278] sm:$0xff]
        %v437 = vld [vmem:[#allocation5 + $0x280] sm:$0xff]
        %v438 = vld [vmem:[#allocation5 + $0x288] sm:$0xff]
        %v439 = vld [vmem:[#allocation5 + $0x290] sm:$0xff]
        %v440 = vld [vmem:[#allocation5 + $0x298] sm:$0xff]
        %v441 = vld [vmem:[#allocation5 + $0x2a0] sm:$0xff]
        %v442 = vld [vmem:[#allocation5 + $0x2a8] sm:$0xff]
        %v443 = vld [vmem:[#allocation5 + $0x2b0] sm:$0xff]
        %v444 = vld [vmem:[#allocation5 + $0x2b8] sm:$0xff]
        %v445 = vld [vmem:[#allocation5 + $0x2c0] sm:$0xff]
        %v446 = vld [vmem:[#allocation5 + $0x2c8] sm:$0xff]
        %v447 = vld [vmem:[#allocation5 + $0x2d0] sm:$0xff]
        %v448 = vld [vmem:[#allocation5 + $0x2d8] sm:$0xff]
        %v449 = vld [vmem:[#allocation5 + $0x2e0] sm:$0xff]
        %v450 = vld [vmem:[#allocation5 + $0x2e8] sm:$0xff]
        %v451 = vld [vmem:[#allocation5 + $0x2f0] sm:$0xff]
        %v452 = vld [vmem:[#allocation5 + $0x2f8] sm:$0xff]
        %v453 = vld [vmem:[#allocation5 + $0x300] sm:$0xff]
        %v454 = vld [vmem:[#allocation5 + $0x308] sm:$0xff]
        %v455 = vld [vmem:[#allocation5 + $0x310] sm:$0xff]
        %v456 = vld [vmem:[#allocation5 + $0x318] sm:$0xff]
        %v457 = vld [vmem:[#allocation5 + $0x320] sm:$0xff]
        %v458 = vld [vmem:[#allocation5 + $0x328] sm:$0xff]
        %v459 = vld [vmem:[#allocation5 + $0x330] sm:$0xff]
        %v460 = vld [vmem:[#allocation5 + $0x338] sm:$0xff]
        %v461 = vld [vmem:[#allocation5 + $0x340] sm:$0xff]
        %v462 = vld [vmem:[#allocation5 + $0x348] sm:$0xff]
        %v463 = vld [vmem:[#allocation5 + $0x350] sm:$0xff]
        %v464 = vld [vmem:[#allocation5 + $0x358] sm:$0xff]
        %v465 = vld [vmem:[#allocation5 + $0x360] sm:$0xff]
        %v466 = vld [vmem:[#allocation5 + $0x368] sm:$0xff]
        %v467 = vld [vmem:[#allocation5 + $0x370] sm:$0xff]
        %v468 = vld [vmem:[#allocation5 + $0x378] sm:$0xff]
        %v469 = vld [vmem:[#allocation5 + $0x380] sm:$0xff]
        %v470 = vld [vmem:[#allocation5 + $0x388] sm:$0xff]
        %v471 = vld [vmem:[#allocation5 + $0x390] sm:$0xff]
        %v472 = vld [vmem:[#allocation5 + $0x398] sm:$0xff]
        %v473 = vld [vmem:[#allocation5 + $0x3a0] sm:$0xff]
        %v474 = vld [vmem:[#allocation5 + $0x3a8] sm:$0xff]
        %v475 = vld [vmem:[#allocation5 + $0x3b0] sm:$0xff]
        %v476 = vld [vmem:[#allocation5 + $0x3b8] sm:$0xff]
        %v477 = vld [vmem:[#allocation5 + $0x3c0] sm:$0xff]
        %v478 = vld [vmem:[#allocation5 + $0x3c8] sm:$0xff]
        %v479 = vld [vmem:[#allocation5 + $0x3d0] sm:$0xff]
        %v480 = vld [vmem:[#allocation5 + $0x3d8] sm:$0xff]
        %v481 = vld [vmem:[#allocation5 + $0x3e0] sm:$0xff]
        %v482 = vld [vmem:[#allocation5 + $0x3e8] sm:$0xff]
        %v483 = vld [vmem:[#allocation5 + $0x3f0] sm:$0xff]
        %v484 = vld [vmem:[#allocation5 + $0x3f8] sm:$0xff]
        %v485 = vld [vmem:[#allocation5 + $0x400] sm:$0xff]
        %v486 = vld [vmem:[#allocation5 + $0x408] sm:$0xff]
        %v487 = vld [vmem:[#allocation5 + $0x410] sm:$0xff]
        %v488 = vld [vmem:[#allocation5 + $0x418] sm:$0xff]
        %v489 = vld [vmem:[#allocation5 + $0x420] sm:$0xff]
        %v490 = vld [vmem:[#allocation5 + $0x428] sm:$0xff]
        %v491 = vld [vmem:[#allocation5 + $0x430] sm:$0xff]
        %v492 = vld [vmem:[#allocation5 + $0x438] sm:$0xff]
        %v493 = vld [vmem:[#allocation5 + $0x440] sm:$0xff]
        %v494 = vld [vmem:[#allocation5 + $0x448] sm:$0xff]
        %v495 = vld [vmem:[#allocation5 + $0x450] sm:$0xff]
        %v496 = vld [vmem:[#allocation5 + $0x458] sm:$0xff]
        %v497 = vld [vmem:[#allocation5 + $0x460] sm:$0xff]
        %v498 = vld [vmem:[#allocation5 + $0x468] sm:$0xff]
        %v499 = vld [vmem:[#allocation5 + $0x470] sm:$0xff]
        %v500 = vld [vmem:[#allocation5 + $0x478] sm:$0xff]
        %v501 = vld [vmem:[#allocation5 + $0x480] sm:$0xff]
        %v502 = vld [vmem:[#allocation5 + $0x488] sm:$0xff]
        %v503 = vld [vmem:[#allocation5 + $0x490] sm:$0xff]
        %v504 = vld [vmem:[#allocation5 + $0x498] sm:$0xff]
        %v505 = vld [vmem:[#allocation5 + $0x4a0] sm:$0xff]
        %v506 = vld [vmem:[#allocation5 + $0x4a8] sm:$0xff]
        %v507 = vld [vmem:[#allocation5 + $0x4b0] sm:$0xff]
        %v508 = vld [vmem:[#allocation5 + $0x4b8] sm:$0xff]
        %v509 = vld [vmem:[#allocation5 + $0x4c0] sm:$0xff]
        %v510 = vld [vmem:[#allocation5 + $0x4c8] sm:$0xff]
        %v511 = vld [vmem:[#allocation5 + $0x4d0] sm:$0xff]
        %v512 = vld [vmem:[#allocation5 + $0x4d8] sm:$0xff]
        %v513 = vld [vmem:[#allocation5 + $0x4e0] sm:$0xff]
        %v514 = vld [vmem:[#allocation5 + $0x4e8] sm:$0xff]
        %v515 = vld [vmem:[#allocation5 + $0x4f0] sm:$0xff]
        %v516 = vld [vmem:[#allocation5 + $0x4f8] sm:$0xff]
        %v517 = vld [vmem:[#allocation5 + $0x500] sm:$0xff]
        %v518 = vld [vmem:[#allocation5 + $0x508] sm:$0xff]
        %v519 = vld [vmem:[#allocation5 + $0x510] sm:$0xff]
        %v520 = vld [vmem:[#allocation5 + $0x518] sm:$0xff]
        %v521 = vld [vmem:[#allocation5 + $0x520] sm:$0xff]
        %v522 = vld [vmem:[#allocation5 + $0x528] sm:$0xff]
        %v523 = vld [vmem:[#allocation5 + $0x530] sm:$0xff]
        %v524 = vld [vmem:[#allocation5 + $0x538] sm:$0xff]
        %v525 = vld [vmem:[#allocation5 + $0x540] sm:$0xff]
        %v526 = vld [vmem:[#allocation5 + $0x548] sm:$0xff]
        %v527 = vld [vmem:[#allocation5 + $0x550] sm:$0xff]
        %v528 = vld [vmem:[#allocation5 + $0x558] sm:$0xff]
        %v529 = vld [vmem:[#allocation5 + $0x560] sm:$0xff]
        %v530 = vld [vmem:[#allocation5 + $0x568] sm:$0xff]
        %v531 = vld [vmem:[#allocation5 + $0x570] sm:$0xff]
        %v532 = vld [vmem:[#allocation5 + $0x578] sm:$0xff]
        %v533 = vld [vmem:[#allocation5 + $0x580] sm:$0xff]
        %v534 = vld [vmem:[#allocation5 + $0x588] sm:$0xff]
        %v535 = vld [vmem:[#allocation5 + $0x590] sm:$0xff]
        %v536 = vld [vmem:[#allocation5 + $0x598] sm:$0xff]
        %v537 = vld [vmem:[#allocation5 + $0x5a0] sm:$0xff]
        %v538 = vld [vmem:[#allocation5 + $0x5a8] sm:$0xff]
        %v539 = vld [vmem:[#allocation5 + $0x5b0] sm:$0xff]
        %v540 = vld [vmem:[#allocation5 + $0x5b8] sm:$0xff]
        %v541 = vld [vmem:[#allocation5 + $0x5c0] sm:$0xff]
        %v542 = vld [vmem:[#allocation5 + $0x5c8] sm:$0xff]
        %v543 = vld [vmem:[#allocation5 + $0x5d0] sm:$0xff]
        %v544 = vld [vmem:[#allocation5 + $0x5d8] sm:$0xff]
        %v545 = vld [vmem:[#allocation5 + $0x5e0] sm:$0xff]
        %v546 = vld [vmem:[#allocation5 + $0x5e8] sm:$0xff]
        %v547 = vld [vmem:[#allocation5 + $0x5f0] sm:$0xff]
        %v548 = vld [vmem:[#allocation5 + $0x5f8] sm:$0xff]
        %v549 = vld [vmem:[#allocation7] sm:$0x3f]
        %v551 = vlaneseq
        %v552 = vshrl.u32 %v551, 7
        %v553 = vsub.s32 0, %v552
        %v554 = vrot.slane %v549, %v553
        %v555 = vlaneseq
        %v556 = vshrl.u32 %v555, 7
        %v557 = vsub.s32 1, %v556
        %v558 = vrot.slane %v549, %v557
        %v559 = vlaneseq
        %v560 = vshrl.u32 %v559, 7
        %v561 = vsub.s32 2, %v560
        %v562 = vrot.slane %v549, %v561
        %v563 = vlaneseq
        %v564 = vshrl.u32 %v563, 7
        %v565 = vsub.s32 3, %v564
        %v566 = vrot.slane %v549, %v565
        %v567 = vlaneseq
        %v568 = vshrl.u32 %v567, 7
        %v569 = vsub.s32 4, %v568
        %v570 = vrot.slane %v549, %v569
        %v571 = vlaneseq
        %v572 = vshrl.u32 %v571, 7
        %v573 = vsub.s32 5, %v572
        %v574 = vrot.slane %v549, %v573
        %581 = vmatprep.subr.mxu0 %v358
        %582 = vmatpush1.msra.mxu0 %v357
        %583 = vmatprep.subr.mxu0 %v364
        %584 = vmatpush1.msra.mxu0 %v363
        %585 = vmatprep.subr.mxu0 %v370
        %586 = vmatpush1.msra.mxu0 %v369
        %587 = vmatprep.subr.mxu0 %v376
        %588 = vmatpush1.msra.mxu0 %v375
        %589 = vmatprep.subr.mxu0 %v382
        %590 = vmatpush1.msra.mxu0 %v381
        %591 = vmatprep.subr.mxu0 %v388
        %592 = vmatpush1.msra.mxu0 %v387
        %593 = vmatprep.subr.mxu0 %v394
        %594 = vmatpush1.msra.mxu0 %v393
        %595 = vmatprep.subr.mxu0 %v400
        %596 = vmatpush1.msra.mxu0 %v399
        %597 = vmatprep.subr.mxu0 %v406
        %598 = vmatpush1.msra.mxu0 %v405
        %599 = vmatprep.subr.mxu0 %v412
        %600 = vmatpush1.msra.mxu0 %v411
        %601 = vmatprep.subr.mxu0 %v418
        %602 = vmatpush1.msra.mxu0 %v417
        %603 = vmatprep.subr.mxu0 %v424
        %604 = vmatpush1.msra.mxu0 %v423
        %605 = vmatprep.subr.mxu0 %v430
        %606 = vmatpush1.msra.mxu0 %v429
        %607 = vmatprep.subr.mxu0 %v436
        %608 = vmatpush1.msra.mxu0 %v435
        %609 = vmatprep.subr.mxu0 %v442
        %610 = vmatpush1.msra.mxu0 %v441
        %611 = vmatprep.subr.mxu0 %v448
        %612 = vmatpush1.msra.mxu0 %v447
        %613 = vmatprep.subr.mxu0 %v454
        %614 = vmatpush1.msra.mxu0 %v453
        %615 = vmatprep.subr.mxu0 %v460
        %616 = vmatpush1.msra.mxu0 %v459
        %617 = vmatprep.subr.mxu0 %v466
        %618 = vmatpush1.msra.mxu0 %v465
        %619 = vmatprep.subr.mxu0 %v472
        %620 = vmatpush1.msra.mxu0 %v471
        %621 = vmatprep.subr.mxu0 %v478
        %622 = vmatpush1.msra.mxu0 %v477
        %623 = vmatprep.subr.mxu0 %v484
        %624 = vmatpush1.msra.mxu0 %v483
        %625 = vmatprep.subr.mxu0 %v490
        %626 = vmatpush1.msra.mxu0 %v489
        %627 = vmatprep.subr.mxu0 %v496
        %628 = vmatpush1.msra.mxu0 %v495
        %629 = vmatprep.subr.mxu0 %v502
        %630 = vmatpush1.msra.mxu0 %v501
        %631 = vmatprep.subr.mxu0 %v508
        %632 = vmatpush1.msra.mxu0 %v507
        %633 = vmatprep.subr.mxu0 %v514
        %634 = vmatpush1.msra.mxu0 %v513
        %635 = vmatprep.subr.mxu0 %v520
        %636 = vmatpush1.msra.mxu0 %v519
        %637 = vmatprep.subr.mxu0 %v526
        %638 = vmatpush1.msra.mxu0 %v525
        %639 = vmatprep.subr.mxu0 %v532
        %640 = vmatpush1.msra.mxu0 %v531
        %641 = vmatprep.subr.mxu0 %v538
        %642 = vmatpush1.msra.mxu0 %v537
        %643 = vmatprep.subr.mxu0 %v544
        %644 = vmatpush1.msra.mxu0 %v543
        %645 = vmatprep.mubr.f32.mxu0 %v354
        %646 = vmatmul.mubr.f32.gmra.mrb[0].mxu0 %v353
        %v647 = vpop.f32.mrb[0].mxu0
        %v648 = vadd.f32 %v554, %v647
        %v649 = vpop.f32.mrb[0].mxu0
        %v650 = vadd.f32 %v558, %v649
        %651 = vmatprep.mubr.f32.mxu0 %v356
        %652 = vmatmul.mubr.f32.gmra.mrb[0].mxu0 %v355
        %v653 = vpop.f32.mrb[0].mxu0
        %v654 = vadd.f32 %v554, %v653
        %v655 = vpop.f32.mrb[0].mxu0
        %v656 = vadd.f32 %v558, %v655
        %657 = vdwg.mxu0
        %658 = vmatprep.subr.mxu0 %v360
        %659 = vmatpush1.msra.mxu0 %v359
        %660 = vmatprep.subr.mxu0 %v366
        %661 = vmatpush1.msra.mxu0 %v365
        %662 = vmatprep.subr.mxu0 %v372
        %663 = vmatpush1.msra.mxu0 %v371
        %664 = vmatprep.subr.mxu0 %v378
        %665 = vmatpush1.msra.mxu0 %v377
        %666 = vmatprep.subr.mxu0 %v384
        %667 = vmatpush1.msra.mxu0 %v383
        %668 = vmatprep.subr.mxu0 %v390
        %669 = vmatpush1.msra.mxu0 %v389
        %670 = vmatprep.subr.mxu0 %v396
        %671 = vmatpush1.msra.mxu0 %v395
        %672 = vmatprep.subr.mxu0 %v402
        %673 = vmatpush1.msra.mxu0 %v401
        %674 = vmatprep.subr.mxu0 %v408
        %675 = vmatpush1.msra.mxu0 %v407
        %676 = vmatprep.subr.mxu0 %v414
        %677 = vmatpush1.msra.mxu0 %v413
        %678 = vmatprep.subr.mxu0 %v420
        %679 = vmatpush1.msra.mxu0 %v419
        %680 = vmatprep.subr.mxu0 %v426
        %681 = vmatpush1.msra.mxu0 %v425
        %682 = vmatprep.subr.mxu0 %v432
        %683 = vmatpush1.msra.mxu0 %v431
        %684 = vmatprep.subr.mxu0 %v438
        %685 = vmatpush1.msra.mxu0 %v437
        %686 = vmatprep.subr.mxu0 %v444
        %687 = vmatpush1.msra.mxu0 %v443
        %688 = vmatprep.subr.mxu0 %v450
        %689 = vmatpush1.msra.mxu0 %v449
        %690 = vmatprep.subr.mxu0 %v456
        %691 = vmatpush1.msra.mxu0 %v455
        %692 = vmatprep.subr.mxu0 %v462
        %693 = vmatpush1.msra.mxu0 %v461
        %694 = vmatprep.subr.mxu0 %v468
        %695 = vmatpush1.msra.mxu0 %v467
        %696 = vmatprep.subr.mxu0 %v474
        %697 = vmatpush1.msra.mxu0 %v473
        %698 = vmatprep.subr.mxu0 %v480
        %699 = vmatpush1.msra.mxu0 %v479
        %700 = vmatprep.subr.mxu0 %v486
        %701 = vmatpush1.msra.mxu0 %v485
        %702 = vmatprep.subr.mxu0 %v492
        %703 = vmatpush1.msra.mxu0 %v491
        %704 = vmatprep.subr.mxu0 %v498
        %705 = vmatpush1.msra.mxu0 %v497
        %706 = vmatprep.subr.mxu0 %v504
        %707 = vmatpush1.msra.mxu0 %v503
        %708 = vmatprep.subr.mxu0 %v510
        %709 = vmatpush1.msra.mxu0 %v509
        %710 = vmatprep.subr.mxu0 %v516
        %711 = vmatpush1.msra.mxu0 %v515
        %712 = vmatprep.subr.mxu0 %v522
        %713 = vmatpush1.msra.mxu0 %v521
        %714 = vmatprep.subr.mxu0 %v528
        %715 = vmatpush1.msra.mxu0 %v527
        %716 = vmatprep.subr.mxu0 %v534
        %717 = vmatpush1.msra.mxu0 %v533
        %718 = vmatprep.subr.mxu0 %v540
        %719 = vmatpush1.msra.mxu0 %v539
        %720 = vmatprep.subr.mxu0 %v546
        %721 = vmatpush1.msra.mxu0 %v545
        %722 = vmatprep.mubr.f32.mxu0 %v354
        %723 = vmatmul.mubr.f32.gmra.mrb[0].mxu0 %v353
        %v724 = vpop.f32.mrb[0].mxu0
        %v725 = vadd.f32 %v562, %v724
        %v726 = vpop.f32.mrb[0].mxu0
        %v727 = vadd.f32 %v566, %v726
        %728 = vmatprep.mubr.f32.mxu0 %v356
        %729 = vmatmul.mubr.f32.gmra.mrb[0].mxu0 %v355
        %v730 = vpop.f32.mrb[0].mxu0
        %v731 = vadd.f32 %v562, %v730
        %v732 = vpop.f32.mrb[0].mxu0
        %v733 = vadd.f32 %v566, %v732
        %734 = vdwg.mxu0
        %735 = vmatprep.subr.mxu0 %v362
        %736 = vmatpush1.msra.mxu0 %v361
        %737 = vmatprep.subr.mxu0 %v368
        %738 = vmatpush1.msra.mxu0 %v367
        %739 = vmatprep.subr.mxu0 %v374
        %740 = vmatpush1.msra.mxu0 %v373
        %741 = vmatprep.subr.mxu0 %v380
        %742 = vmatpush1.msra.mxu0 %v379
        %743 = vmatprep.subr.mxu0 %v386
        %744 = vmatpush1.msra.mxu0 %v385
        %745 = vmatprep.subr.mxu0 %v392
        %746 = vmatpush1.msra.mxu0 %v391
        %747 = vmatprep.subr.mxu0 %v398
        %748 = vmatpush1.msra.mxu0 %v397
        %749 = vmatprep.subr.mxu0 %v404
        %750 = vmatpush1.msra.mxu0 %v403
        %751 = vmatprep.subr.mxu0 %v410
        %752 = vmatpush1.msra.mxu0 %v409
        %753 = vmatprep.subr.mxu0 %v416
        %754 = vmatpush1.msra.mxu0 %v415
        %755 = vmatprep.subr.mxu0 %v422
        %756 = vmatpush1.msra.mxu0 %v421
        %757 = vmatprep.subr.mxu0 %v428
        %758 = vmatpush1.msra.mxu0 %v427
        %759 = vmatprep.subr.mxu0 %v434
        %760 = vmatpush1.msra.mxu0 %v433
        %761 = vmatprep.subr.mxu0 %v440
        %762 = vmatpush1.msra.mxu0 %v439
        %763 = vmatprep.subr.mxu0 %v446
        %764 = vmatpush1.msra.mxu0 %v445
        %765 = vmatprep.subr.mxu0 %v452
        %766 = vmatpush1.msra.mxu0 %v451
        %767 = vmatprep.subr.mxu0 %v458
        %768 = vmatpush1.msra.mxu0 %v457
        %769 = vmatprep.subr.mxu0 %v464
        %770 = vmatpush1.msra.mxu0 %v463
        %771 = vmatprep.subr.mxu0 %v470
        %772 = vmatpush1.msra.mxu0 %v469
        %773 = vmatprep.subr.mxu0 %v476
        %774 = vmatpush1.msra.mxu0 %v475
        %775 = vmatprep.subr.mxu0 %v482
        %776 = vmatpush1.msra.mxu0 %v481
        %777 = vmatprep.subr.mxu0 %v488
        %778 = vmatpush1.msra.mxu0 %v487
        %779 = vmatprep.subr.mxu0 %v494
        %780 = vmatpush1.msra.mxu0 %v493
        %781 = vmatprep.subr.mxu0 %v500
        %782 = vmatpush1.msra.mxu0 %v499
        %783 = vmatprep.subr.mxu0 %v506
        %784 = vmatpush1.msra.mxu0 %v505
        %785 = vmatprep.subr.mxu0 %v512
        %786 = vmatpush1.msra.mxu0 %v511
        %787 = vmatprep.subr.mxu0 %v518
        %788 = vmatpush1.msra.mxu0 %v517
        %789 = vmatprep.subr.mxu0 %v524
        %790 = vmatpush1.msra.mxu0 %v523
        %791 = vmatprep.subr.mxu0 %v530
        %792 = vmatpush1.msra.mxu0 %v529
        %793 = vmatprep.subr.mxu0 %v536
        %794 = vmatpush1.msra.mxu0 %v535
        %795 = vmatprep.subr.mxu0 %v542
        %796 = vmatpush1.msra.mxu0 %v541
        %797 = vmatprep.subr.mxu0 %v548
        %798 = vmatpush1.msra.mxu0 %v547
        %799 = vmatprep.mubr.f32.mxu0 %v354
        %800 = vmatmul.mubr.f32.gmra.mrb[0].mxu0 %v353
        %v801 = vpop.f32.mrb[0].mxu0
        %v802 = vadd.f32 %v570, %v801
        %v803 = vpop.f32.mrb[0].mxu0
        %v804 = vadd.f32 %v574, %v803
        %805 = vmatprep.mubr.f32.mxu0 %v356
        %806 = vmatmul.mubr.f32.gmra.mrb[0].mxu0 %v355
        %v807 = vpop.f32.mrb[0].mxu0
        %v808 = vadd.f32 %v570, %v807
        %v809 = vpop.f32.mrb[0].mxu0
        %v810 = vadd.f32 %v574, %v809
        %811 = vdwg.mxu0
        %v812 = vmul.f32 %v648, 0.088388346
        %v813 = vmul.f32 %v650, 0.088388346
        %v814 = vmul.f32 %v654, 0.088388346
        %v815 = vmul.f32 %v656, 0.088388346
        %v816 = vld [vmem:[%s5] sm:$0xff]
        %v817 = vld [vmem:[%s5 + $0x8] sm:$0xff]
        %v818 = vld [vmem:[#allocation10] sm:$0xff]
        %v819 = vld [vmem:[#allocation10 + $0x8] sm:$0xff]
        %v820 = vmul.f32 %v812, %v816
        %v821 = vmul.f32 %v814, %v817
        %822 = vrot.lane.b32.xlu0 %v812, 64
        %v823 = vpop.permute.xlu0 %822
        %824 = vrot.lane.b32.xlu0 %v814, 64
        %v825 = vpop.permute.xlu0 %824
        %v826 = vmul.f32 %v823, %v818
        %v827 = vmul.f32 %v825, %v819
        %v828 = vadd.f32 %v820, %v826
        %v829 = vadd.f32 %v821, %v827
        %v830 = vmul.f32 %v813, %v816
        %v831 = vmul.f32 %v815, %v817
        %832 = vrot.lane.b32.xlu0 %v813, 64
        %v833 = vpop.permute.xlu0 %832
        %834 = vrot.lane.b32.xlu0 %v815, 64
        %v835 = vpop.permute.xlu0 %834
        %v836 = vmul.f32 %v833, %v818
        %v837 = vmul.f32 %v835, %v819
        %v838 = vadd.f32 %v830, %v836
        %v839 = vadd.f32 %v831, %v837
        %v840 = vmul.f32 %v725, %v816
        %v841 = vmul.f32 %v731, %v817
        %842 = vrot.lane.b32.xlu0 %v725, 64
        %v843 = vpop.permute.xlu0 %842
        %844 = vrot.lane.b32.xlu0 %v731, 64
        %v845 = vpop.permute.xlu0 %844
        %v846 = vmul.f32 %v843, %v818
        %v847 = vmul.f32 %v845, %v819
        %v848 = vadd.f32 %v840, %v846
        %v849 = vadd.f32 %v841, %v847
        %v850 = vmul.f32 %v727, %v816
        %v851 = vmul.f32 %v733, %v817
        %852 = vrot.lane.b32.xlu0 %v727, 64
        %v853 = vpop.permute.xlu0 %852
        %854 = vrot.lane.b32.xlu0 %v733, 64
        %v855 = vpop.permute.xlu0 %854
        %v856 = vmul.f32 %v853, %v818
        %v857 = vmul.f32 %v855, %v819
        %v858 = vadd.f32 %v850, %v856
        %v859 = vadd.f32 %v851, %v857
        %860 = vmatprep.subr.mxu0 0.0
        %861 = vmatpush1.xpose.msra.mxu0 %v848
        %862 = vmatprep.subr.mxu0 0.0
        %863 = vmatpush1.xpose.msra.mxu0 %v849
        %864 = vmatprep.subr.mxu0 0.0
        %865 = vmatpush1.xpose.msra.mxu0 0.0
        %866 = vmatprep.subr.mxu0 0.0
        %867 = vmatpush1.xpose.msra.mxu0 0.0
        %868 = vmatprep.subr.mxu0 0.0
        %869 = vmatpush1.xpose.msra.mxu0 0.0
        %870 = vmatprep.subr.mxu0 0.0
        %871 = vmatpush1.xpose.msra.mxu0 0.0
        %872 = vmatprep.subr.mxu0 0.0
        %873 = vmatpush1.xpose.msra.mxu0 0.0
        %874 = vmatprep.subr.mxu0 0.0
        %875 = vmatpush1.xpose.msra.mxu0 0.0
        %876 = vmatprep.subr.mxu0 0.0
        %877 = vmatpush1.xpose.msra.mxu0 0.0
        %878 = vmatprep.subr.mxu0 0.0
        %879 = vmatpush1.xpose.msra.mxu0 0.0
        %880 = vmatprep.subr.mxu0 0.0
        %881 = vmatpush1.xpose.msra.mxu0 0.0
        %882 = vmatprep.subr.mxu0 0.0
        %883 = vmatpush1.xpose.msra.mxu0 0.0
        %884 = vmatprep.subr.mxu0 0.0
        %885 = vmatpush1.xpose.msra.mxu0 0.0
        %886 = vmatprep.subr.mxu0 0.0
        %887 = vmatpush1.xpose.msra.mxu0 0.0
        %888 = vmatprep.subr.mxu0 0.0
        %889 = vmatpush1.xpose.msra.mxu0 0.0
        %890 = vmatprep.subr.mxu0 0.0
        %891 = vmatpush1.xpose.msra.mxu0 0.0
        %892 = vmatprep.subr.mxu0 0.0
        %893 = vmatpush1.xpose.msra.mxu0 0.0
        %894 = vmatprep.subr.mxu0 0.0
        %895 = vmatpush1.xpose.msra.mxu0 0.0
        %896 = vmatprep.subr.mxu0 0.0
        %897 = vmatpush1.xpose.msra.mxu0 0.0
        %898 = vmatprep.subr.mxu0 0.0
        %899 = vmatpush1.xpose.msra.mxu0 0.0
        %900 = vmatprep.subr.mxu0 0.0
        %901 = vmatpush1.xpose.msra.mxu0 0.0
        %902 = vmatprep.subr.mxu0 0.0
        %903 = vmatpush1.xpose.msra.mxu0 0.0
        %904 = vmatprep.subr.mxu0 0.0
        %905 = vmatpush1.xpose.msra.mxu0 0.0
        %906 = vmatprep.subr.mxu0 0.0
        %907 = vmatpush1.xpose.msra.mxu0 0.0
        %908 = vmatprep.subr.mxu0 0.0
        %909 = vmatpush1.xpose.msra.mxu0 0.0
        %910 = vmatprep.subr.mxu0 0.0
        %911 = vmatpush1.xpose.msra.mxu0 0.0
        %912 = vmatprep.subr.mxu0 0.0
        %913 = vmatpush1.xpose.msra.mxu0 0.0
        %914 = vmatprep.subr.mxu0 0.0
        %915 = vmatpush1.xpose.msra.mxu0 0.0
        %916 = vmatprep.subr.mxu0 0.0
        %917 = vmatpush1.xpose.msra.mxu0 0.0
        %918 = vmatprep.subr.mxu0 0.0
        %919 = vmatpush1.xpose.msra.mxu0 0.0
        %920 = vmatprep.subr.mxu0 0.0
        %921 = vmatpush1.xpose.msra.mxu0 0.0
        %922 = vmatprep.subr.mxu0 0.0
        %923 = vmatpush1.xpose.msra.mxu0 0.0
        %924 = vmatprep.mubr.f32.mxu0 0.0
        %925 = vmatmul.mubr.f32.gmra.mrb[0].mxu0 %v828
        %v926 = vpop.f32.mrb[0].mxu0
        %v927 = vadd.f32 0.0, %v926
        %v928 = vpop.f32.mrb[0].mxu0
        %929 = vmatprep.mubr.f32.mxu0 0.0
        %930 = vmatmul.mubr.f32.gmra.mrb[0].mxu0 %v829
        %v931 = vpop.f32.mrb[0].mxu0
        %v932 = vadd.f32 0.0, %v931
        %v933 = vpop.f32.mrb[0].mxu0
        %934 = vdwg.mxu0
        %935 = vmatprep.subr.mxu0 0.0
        %936 = vmatpush1.xpose.msra.mxu0 %v858
        %937 = vmatprep.subr.mxu0 0.0
        %938 = vmatpush1.xpose.msra.mxu0 %v859
        %939 = vmatprep.subr.mxu0 0.0
        %940 = vmatpush1.xpose.msra.mxu0 0.0
        %941 = vmatprep.subr.mxu0 0.0
        %942 = vmatpush1.xpose.msra.mxu0 0.0
        %943 = vmatprep.subr.mxu0 0.0
        %944 = vmatpush1.xpose.msra.mxu0 0.0
        %945 = vmatprep.subr.mxu0 0.0
        %946 = vmatpush1.xpose.msra.mxu0 0.0
        %947 = vmatprep.subr.mxu0 0.0
        %948 = vmatpush1.xpose.msra.mxu0 0.0
        %949 = vmatprep.subr.mxu0 0.0
        %950 = vmatpush1.xpose.msra.mxu0 0.0
        %951 = vmatprep.subr.mxu0 0.0
        %952 = vmatpush1.xpose.msra.mxu0 0.0
        %953 = vmatprep.subr.mxu0 0.0
        %954 = vmatpush1.xpose.msra.mxu0 0.0
        %955 = vmatprep.subr.mxu0 0.0
        %956 = vmatpush1.xpose.msra.mxu0 0.0
        %957 = vmatprep.subr.mxu0 0.0
        %958 = vmatpush1.xpose.msra.mxu0 0.0
        %959 = vmatprep.subr.mxu0 0.0
        %960 = vmatpush1.xpose.msra.mxu0 0.0
        %961 = vmatprep.subr.mxu0 0.0
        %962 = vmatpush1.xpose.msra.mxu0 0.0
        %963 = vmatprep.subr.mxu0 0.0
        %964 = vmatpush1.xpose.msra.mxu0 0.0
        %965 = vmatprep.subr.mxu0 0.0
        %966 = vmatpush1.xpose.msra.mxu0 0.0
        %967 = vmatprep.subr.mxu0 0.0
        %968 = vmatpush1.xpose.msra.mxu0 0.0
        %969 = vmatprep.subr.mxu0 0.0
        %970 = vmatpush1.xpose.msra.mxu0 0.0
        %971 = vmatprep.subr.mxu0 0.0
        %972 = vmatpush1.xpose.msra.mxu0 0.0
        %973 = vmatprep.subr.mxu0 0.0
        %974 = vmatpush1.xpose.msra.mxu0 0.0
        %975 = vmatprep.subr.mxu0 0.0
        %976 = vmatpush1.xpose.msra.mxu0 0.0
        %977 = vmatprep.subr.mxu0 0.0
        %978 = vmatpush1.xpose.msra.mxu0 0.0
        %979 = vmatprep.subr.mxu0 0.0
        %980 = vmatpush1.xpose.msra.mxu0 0.0
        %981 = vmatprep.subr.mxu0 0.0
        %982 = vmatpush1.xpose.msra.mxu0 0.0
        %983 = vmatprep.subr.mxu0 0.0
        %984 = vmatpush1.xpose.msra.mxu0 0.0
        %985 = vmatprep.subr.mxu0 0.0
        %986 = vmatpush1.xpose.msra.mxu0 0.0
        %987 = vmatprep.subr.mxu0 0.0
        %988 = vmatpush1.xpose.msra.mxu0 0.0
        %989 = vmatprep.subr.mxu0 0.0
        %990 = vmatpush1.xpose.msra.mxu0 0.0
        %991 = vmatprep.subr.mxu0 0.0
        %992 = vmatpush1.xpose.msra.mxu0 0.0
        %993 = vmatprep.subr.mxu0 0.0
        %994 = vmatpush1.xpose.msra.mxu0 0.0
        %995 = vmatprep.subr.mxu0 0.0
        %996 = vmatpush1.xpose.msra.mxu0 0.0
        %997 = vmatprep.subr.mxu0 0.0
        %998 = vmatpush1.xpose.msra.mxu0 0.0
        %999 = vmatprep.mubr.f32.mxu0 0.0
        %1000 = vmatmul.mubr.f32.gmra.mrb[0].mxu0 %v838
        %v1001 = vpop.f32.mrb[0].mxu0
        %v1002 = vadd.f32 0.0, %v1001
        %v1003 = vpop.f32.mrb[0].mxu0
        %1004 = vmatprep.mubr.f32.mxu0 0.0
        %1005 = vmatmul.mubr.f32.gmra.mrb[0].mxu0 %v839
        %v1006 = vpop.f32.mrb[0].mxu0
        %v1007 = vadd.f32 0.0, %v1006
        %v1008 = vpop.f32.mrb[0].mxu0
        %1009 = vdwg.mxu0
        %v1010 = vlaneseq
        %v1011 = vshrl.u32 %v1010, 7
        %v1012 = vadd.s32 %v1011, 8
        %v1013 = vlaneseq
        %v1014 = vand.u32 %v1013, 127
        %vm1015 = vcmp.le.s32.totalorder %v1014, %v1011
        %vm1016 = vcmp.le.s32.totalorder %v1014, %v1012
        %v1017 = vsel %vm1015, %v927, -1e+30
        %v1018 = vsel %vm1016, %v932, -1e+30
        %v1019 = vsel %vm1015, %v1002, -1e+30
        %v1020 = vsel %vm1016, %v1007, -1e+30
        %vm1021 = vcmask 130048
        %v1022 = vsel %vm1021, %v1017, -inf
        %1023 = vmax.xlane.f32.xlu0 %v1022
        %v1024 = vpop.xlane.xlu0 %1023
        %v1025 = vsel %vm1021, %v1018, -inf
        %1026 = vmax.xlane.f32.xlu0 %v1025
        %v1027 = vpop.xlane.xlu0 %1026
        %v1028 = vsel %vm1021, %v1019, -inf
        %1029 = vmax.xlane.f32.xlu0 %v1028
        %v1030 = vpop.xlane.xlu0 %1029
        %v1031 = vsel %vm1021, %v1020, -inf
        %1032 = vmax.xlane.f32.xlu0 %v1031
        %v1033 = vpop.xlane.xlu0 %1032
        %v1034 = vsub.f32 %v1017, %v1024
        %v1035 = vsub.f32 %v1018, %v1027
        %v1036 = vsub.f32 %v1019, %v1030
        %v1037 = vsub.f32 %v1020, %v1033
        %v1038 = vmul.f32 %v1034, 1.442695
        %v1039 = vpow.pop %v1038
        %v1040 = vmul.f32 %v1035, 1.442695
        %v1041 = vpow.pop %v1040
        %v1042 = vmul.f32 %v1036, 1.442695
        %v1043 = vpow.pop %v1042
        %v1044 = vmul.f32 %v1037, 1.442695
        %v1045 = vpow.pop %v1044
        %v1046 = vsel %vm1021, %v1039, 0.0
        %1047 = vadd.xlane.f32.xlu0 %v1046
        %v1048 = vpop.xlane.xlu0 %1047
        %v1049 = vsel %vm1021, %v1041, 0.0
        %1050 = vadd.xlane.f32.xlu0 %v1049
        %v1051 = vpop.xlane.xlu0 %1050
        %v1052 = vsel %vm1021, %v1043, 0.0
        %1053 = vadd.xlane.f32.xlu0 %v1052
        %v1054 = vpop.xlane.xlu0 %1053
        %v1055 = vsel %vm1021, %v1045, 0.0
        %1056 = vadd.xlane.f32.xlu0 %v1055
        %v1057 = vpop.xlane.xlu0 %1056
        %v1058 = vrcp.pop %v1048
        %v1059 = vrcp.pop %v1051
        %v1060 = vrcp.pop %v1054
        %v1061 = vrcp.pop %v1057
        %v1062 = vmul.f32 %v1039, %v1058
        %v1063 = vmul.f32 %v1041, %v1059
        %v1064 = vmul.f32 %v1043, %v1060
        %v1065 = vmul.f32 %v1045, %v1061
        %v1067 = vsel %vm1021, %v1062, 0
        %v1070 = vsel %vm1021, %v1063, 0
        %1072 = vmatprep.subr.mxu0 0.0
        %1073 = vmatpush1.msra.mxu0 %v802
        %1074 = vmatprep.subr.mxu0 0.0
        %1075 = vmatpush1.msra.mxu0 %v808
        %1076 = vmatprep.subr.mxu0 0.0
        %1077 = vmatpush1.msra.mxu0 0.0
        %1078 = vmatprep.subr.mxu0 0.0
        %1079 = vmatpush1.msra.mxu0 0.0
        %1080 = vmatprep.subr.mxu0 0.0
        %1081 = vmatpush1.msra.mxu0 0.0
        %1082 = vmatprep.subr.mxu0 0.0
        %1083 = vmatpush1.msra.mxu0 0.0
        %1084 = vmatprep.subr.mxu0 0.0
        %1085 = vmatpush1.msra.mxu0 0.0
        %1086 = vmatprep.subr.mxu0 0.0
        %1087 = vmatpush1.msra.mxu0 0.0
        %1088 = vmatprep.subr.mxu0 0.0
        %1089 = vmatpush1.msra.mxu0 0.0
        %1090 = vmatprep.subr.mxu0 0.0
        %1091 = vmatpush1.msra.mxu0 0.0
        %1092 = vmatprep.subr.mxu0 0.0
        %1093 = vmatpush1.msra.mxu0 0.0
        %1094 = vmatprep.subr.mxu0 0.0
        %1095 = vmatpush1.msra.mxu0 0.0
        %1096 = vmatprep.subr.mxu0 0.0
        %1097 = vmatpush1.msra.mxu0 0.0
        %1098 = vmatprep.subr.mxu0 0.0
        %1099 = vmatpush1.msra.mxu0 0.0
        %1100 = vmatprep.subr.mxu0 0.0
        %1101 = vmatpush1.msra.mxu0 0.0
        %1102 = vmatprep.subr.mxu0 0.0
        %1103 = vmatpush1.msra.mxu0 0.0
        %1104 = vmatprep.subr.mxu0 0.0
        %1105 = vmatpush1.msra.mxu0 0.0
        %1106 = vmatprep.subr.mxu0 0.0
        %1107 = vmatpush1.msra.mxu0 0.0
        %1108 = vmatprep.subr.mxu0 0.0
        %1109 = vmatpush1.msra.mxu0 0.0
        %1110 = vmatprep.subr.mxu0 0.0
        %1111 = vmatpush1.msra.mxu0 0.0
        %1112 = vmatprep.subr.mxu0 0.0
        %1113 = vmatpush1.msra.mxu0 0.0
        %1114 = vmatprep.subr.mxu0 0.0
        %1115 = vmatpush1.msra.mxu0 0.0
        %1116 = vmatprep.subr.mxu0 0.0
        %1117 = vmatpush1.msra.mxu0 0.0
        %1118 = vmatprep.subr.mxu0 0.0
        %1119 = vmatpush1.msra.mxu0 0.0
        %1120 = vmatprep.subr.mxu0 0.0
        %1121 = vmatpush1.msra.mxu0 0.0
        %1122 = vmatprep.subr.mxu0 0.0
        %1123 = vmatpush1.msra.mxu0 0.0
        %1124 = vmatprep.subr.mxu0 0.0
        %1125 = vmatpush1.msra.mxu0 0.0
        %1126 = vmatprep.subr.mxu0 0.0
        %1127 = vmatpush1.msra.mxu0 0.0
        %1128 = vmatprep.subr.mxu0 0.0
        %1129 = vmatpush1.msra.mxu0 0.0
        %1130 = vmatprep.subr.mxu0 0.0
        %1131 = vmatpush1.msra.mxu0 0.0
        %1132 = vmatprep.subr.mxu0 0.0
        %1133 = vmatpush1.msra.mxu0 0.0
        %1134 = vmatprep.subr.mxu0 0.0
        %1135 = vmatpush1.msra.mxu0 0.0
        %1136 = vmatprep.mubr.f32.mxu0 0.0
        %1137 = vmatmul.mubr.f32.gmra.mrb[0].mxu0 %v1067
        %v1138 = vpop.f32.mrb[0].mxu0
        %v1139 = vadd.f32 0.0, %v1138
        %v1140 = vpop.f32.mrb[0].mxu0
        %1141 = vmatprep.mubr.f32.mxu0 0.0
        %1142 = vmatmul.mubr.f32.gmra.mrb[0].mxu0 %v1070
        %v1143 = vpop.f32.mrb[0].mxu0
        %v1144 = vadd.f32 0.0, %v1143
        %v1145 = vpop.f32.mrb[0].mxu0
        %1146 = vdwg.mxu0
        %v1148 = vsel %vm1021, %v1064, 0
        %v1151 = vsel %vm1021, %v1065, 0
        %1153 = vmatprep.subr.mxu0 0.0
        %1154 = vmatpush1.msra.mxu0 %v804
        %1155 = vmatprep.subr.mxu0 0.0
        %1156 = vmatpush1.msra.mxu0 %v810
        %1157 = vmatprep.subr.mxu0 0.0
        %1158 = vmatpush1.msra.mxu0 0.0
        %1159 = vmatprep.subr.mxu0 0.0
        %1160 = vmatpush1.msra.mxu0 0.0
        %1161 = vmatprep.subr.mxu0 0.0
        %1162 = vmatpush1.msra.mxu0 0.0
        %1163 = vmatprep.subr.mxu0 0.0
        %1164 = vmatpush1.msra.mxu0 0.0
        %1165 = vmatprep.subr.mxu0 0.0
        %1166 = vmatpush1.msra.mxu0 0.0
        %1167 = vmatprep.subr.mxu0 0.0
        %1168 = vmatpush1.msra.mxu0 0.0
        %1169 = vmatprep.subr.mxu0 0.0
        %1170 = vmatpush1.msra.mxu0 0.0
        %1171 = vmatprep.subr.mxu0 0.0
        %1172 = vmatpush1.msra.mxu0 0.0
        %1173 = vmatprep.subr.mxu0 0.0
        %1174 = vmatpush1.msra.mxu0 0.0
        %1175 = vmatprep.subr.mxu0 0.0
        %1176 = vmatpush1.msra.mxu0 0.0
        %1177 = vmatprep.subr.mxu0 0.0
        %1178 = vmatpush1.msra.mxu0 0.0
        %1179 = vmatprep.subr.mxu0 0.0
        %1180 = vmatpush1.msra.mxu0 0.0
        %1181 = vmatprep.subr.mxu0 0.0
        %1182 = vmatpush1.msra.mxu0 0.0
        %1183 = vmatprep.subr.mxu0 0.0
        %1184 = vmatpush1.msra.mxu0 0.0
        %1185 = vmatprep.subr.mxu0 0.0
        %1186 = vmatpush1.msra.mxu0 0.0
        %1187 = vmatprep.subr.mxu0 0.0
        %1188 = vmatpush1.msra.mxu0 0.0
        %1189 = vmatprep.subr.mxu0 0.0
        %1190 = vmatpush1.msra.mxu0 0.0
        %1191 = vmatprep.subr.mxu0 0.0
        %1192 = vmatpush1.msra.mxu0 0.0
        %1193 = vmatprep.subr.mxu0 0.0
        %1194 = vmatpush1.msra.mxu0 0.0
        %1195 = vmatprep.subr.mxu0 0.0
        %1196 = vmatpush1.msra.mxu0 0.0
        %1197 = vmatprep.subr.mxu0 0.0
        %1198 = vmatpush1.msra.mxu0 0.0
        %1199 = vmatprep.subr.mxu0 0.0
        %1200 = vmatpush1.msra.mxu0 0.0
        %1201 = vmatprep.subr.mxu0 0.0
        %1202 = vmatpush1.msra.mxu0 0.0
        %1203 = vmatprep.subr.mxu0 0.0
        %1204 = vmatpush1.msra.mxu0 0.0
        %1205 = vmatprep.subr.mxu0 0.0
        %1206 = vmatpush1.msra.mxu0 0.0
        %1207 = vmatprep.subr.mxu0 0.0
        %1208 = vmatpush1.msra.mxu0 0.0
        %1209 = vmatprep.subr.mxu0 0.0
        %1210 = vmatpush1.msra.mxu0 0.0
        %1211 = vmatprep.subr.mxu0 0.0
        %1212 = vmatpush1.msra.mxu0 0.0
        %1213 = vmatprep.subr.mxu0 0.0
        %1214 = vmatpush1.msra.mxu0 0.0
        %1215 = vmatprep.subr.mxu0 0.0
        %1216 = vmatpush1.msra.mxu0 0.0
        %1217 = vmatprep.mubr.f32.mxu0 0.0
        %1218 = vmatmul.mubr.f32.gmra.mrb[0].mxu0 %v1148
        %v1219 = vpop.f32.mrb[0].mxu0
        %v1220 = vadd.f32 0.0, %v1219
        %v1221 = vpop.f32.mrb[0].mxu0
        %1222 = vmatprep.mubr.f32.mxu0 0.0
        %1223 = vmatmul.mubr.f32.gmra.mrb[0].mxu0 %v1151
        %v1224 = vpop.f32.mrb[0].mxu0
        %v1225 = vadd.f32 0.0, %v1224
        %v1226 = vpop.f32.mrb[0].mxu0
        %1227 = vdwg.mxu0
        %v1228 = vld [vmem:[#allocation8] sm:$0xff]
        %v1229 = vld [vmem:[#allocation8 + $0x8] sm:$0xff]
        %v1230 = vld [vmem:[#allocation8 + $0x10] sm:$0xff]
        %v1231 = vld [vmem:[#allocation8 + $0x18] sm:$0xff]
        %v1232 = vld [vmem:[#allocation8 + $0x20] sm:$0xff]
        %v1233 = vld [vmem:[#allocation8 + $0x28] sm:$0xff]
        %v1234 = vld [vmem:[#allocation8 + $0x30] sm:$0xff]
        %v1235 = vld [vmem:[#allocation8 + $0x38] sm:$0xff]
        %v1236 = vld [vmem:[#allocation8 + $0x40] sm:$0xff]
        %v1237 = vld [vmem:[#allocation8 + $0x48] sm:$0xff]
        %v1238 = vld [vmem:[#allocation8 + $0x50] sm:$0xff]
        %v1239 = vld [vmem:[#allocation8 + $0x58] sm:$0xff]
        %v1240 = vld [vmem:[#allocation8 + $0x60] sm:$0xff]
        %v1241 = vld [vmem:[#allocation8 + $0x68] sm:$0xff]
        %v1242 = vld [vmem:[#allocation8 + $0x70] sm:$0xff]
        %v1243 = vld [vmem:[#allocation8 + $0x78] sm:$0xff]
        %v1244 = vld [vmem:[#allocation8 + $0x80] sm:$0xff]
        %v1245 = vld [vmem:[#allocation8 + $0x88] sm:$0xff]
        %v1246 = vld [vmem:[#allocation8 + $0x90] sm:$0xff]
        %v1247 = vld [vmem:[#allocation8 + $0x98] sm:$0xff]
        %v1248 = vld [vmem:[#allocation8 + $0xa0] sm:$0xff]
        %v1249 = vld [vmem:[#allocation8 + $0xa8] sm:$0xff]
        %v1250 = vld [vmem:[#allocation8 + $0xb0] sm:$0xff]
        %v1251 = vld [vmem:[#allocation8 + $0xb8] sm:$0xff]
        %v1252 = vld [vmem:[#allocation8 + $0xc0] sm:$0xff]
        %v1253 = vld [vmem:[#allocation8 + $0xc8] sm:$0xff]
        %v1254 = vld [vmem:[#allocation8 + $0xd0] sm:$0xff]
        %v1255 = vld [vmem:[#allocation8 + $0xd8] sm:$0xff]
        %v1256 = vld [vmem:[#allocation8 + $0xe0] sm:$0xff]
        %v1257 = vld [vmem:[#allocation8 + $0xe8] sm:$0xff]
        %v1258 = vld [vmem:[#allocation8 + $0xf0] sm:$0xff]
        %v1259 = vld [vmem:[#allocation8 + $0xf8] sm:$0xff]
        %v1260 = vld [vmem:[#allocation8 + $0x100] sm:$0xff]
        %v1261 = vld [vmem:[#allocation8 + $0x108] sm:$0xff]
        %v1262 = vld [vmem:[#allocation8 + $0x110] sm:$0xff]
        %v1263 = vld [vmem:[#allocation8 + $0x118] sm:$0xff]
        %v1264 = vld [vmem:[#allocation8 + $0x120] sm:$0xff]
        %v1265 = vld [vmem:[#allocation8 + $0x128] sm:$0xff]
        %v1266 = vld [vmem:[#allocation8 + $0x130] sm:$0xff]
        %v1267 = vld [vmem:[#allocation8 + $0x138] sm:$0xff]
        %v1268 = vld [vmem:[#allocation8 + $0x140] sm:$0xff]
        %v1269 = vld [vmem:[#allocation8 + $0x148] sm:$0xff]
        %v1270 = vld [vmem:[#allocation8 + $0x150] sm:$0xff]
        %v1271 = vld [vmem:[#allocation8 + $0x158] sm:$0xff]
        %v1272 = vld [vmem:[#allocation8 + $0x160] sm:$0xff]
        %v1273 = vld [vmem:[#allocation8 + $0x168] sm:$0xff]
        %v1274 = vld [vmem:[#allocation8 + $0x170] sm:$0xff]
        %v1275 = vld [vmem:[#allocation8 + $0x178] sm:$0xff]
        %v1276 = vld [vmem:[#allocation8 + $0x180] sm:$0xff]
        %v1277 = vld [vmem:[#allocation8 + $0x188] sm:$0xff]
        %v1278 = vld [vmem:[#allocation8 + $0x190] sm:$0xff]
        %v1279 = vld [vmem:[#allocation8 + $0x198] sm:$0xff]
        %v1280 = vld [vmem:[#allocation8 + $0x1a0] sm:$0xff]
        %v1281 = vld [vmem:[#allocation8 + $0x1a8] sm:$0xff]
        %v1282 = vld [vmem:[#allocation8 + $0x1b0] sm:$0xff]
        %v1283 = vld [vmem:[#allocation8 + $0x1b8] sm:$0xff]
        %v1284 = vld [vmem:[#allocation8 + $0x1c0] sm:$0xff]
        %v1285 = vld [vmem:[#allocation8 + $0x1c8] sm:$0xff]
        %v1286 = vld [vmem:[#allocation8 + $0x1d0] sm:$0xff]
        %v1287 = vld [vmem:[#allocation8 + $0x1d8] sm:$0xff]
        %v1288 = vld [vmem:[#allocation8 + $0x1e0] sm:$0xff]
        %v1289 = vld [vmem:[#allocation8 + $0x1e8] sm:$0xff]
        %v1290 = vld [vmem:[#allocation8 + $0x1f0] sm:$0xff]
        %v1291 = vld [vmem:[#allocation8 + $0x1f8] sm:$0xff]
        %v1292 = vld [vmem:[%s4] sm:$0x3]
        %v1294 = vlaneseq
        %v1295 = vshrl.u32 %v1294, 7
        %v1296 = vsub.s32 0, %v1295
        %v1297 = vrot.slane %v1292, %v1296
        %v1298 = vlaneseq
        %v1299 = vshrl.u32 %v1298, 7
        %v1300 = vsub.s32 1, %v1299
        %v1301 = vrot.slane %v1292, %v1300
        %1304 = vmatprep.subr.mxu0 %v1229
        %1305 = vmatpush1.msra.mxu0 %v1228
        %1306 = vmatprep.subr.mxu0 %v1231
        %1307 = vmatpush1.msra.mxu0 %v1230
        %1308 = vmatprep.subr.mxu0 %v1233
        %1309 = vmatpush1.msra.mxu0 %v1232
        %1310 = vmatprep.subr.mxu0 %v1235
        %1311 = vmatpush1.msra.mxu0 %v1234
        %1312 = vmatprep.subr.mxu0 %v1237
        %1313 = vmatpush1.msra.mxu0 %v1236
        %1314 = vmatprep.subr.mxu0 %v1239
        %1315 = vmatpush1.msra.mxu0 %v1238
        %1316 = vmatprep.subr.mxu0 %v1241
        %1317 = vmatpush1.msra.mxu0 %v1240
        %1318 = vmatprep.subr.mxu0 %v1243
        %1319 = vmatpush1.msra.mxu0 %v1242
        %1320 = vmatprep.subr.mxu0 %v1245
        %1321 = vmatpush1.msra.mxu0 %v1244
        %1322 = vmatprep.subr.mxu0 %v1247
        %1323 = vmatpush1.msra.mxu0 %v1246
        %1324 = vmatprep.subr.mxu0 %v1249
        %1325 = vmatpush1.msra.mxu0 %v1248
        %1326 = vmatprep.subr.mxu0 %v1251
        %1327 = vmatpush1.msra.mxu0 %v1250
        %1328 = vmatprep.subr.mxu0 %v1253
        %1329 = vmatpush1.msra.mxu0 %v1252
        %1330 = vmatprep.subr.mxu0 %v1255
        %1331 = vmatpush1.msra.mxu0 %v1254
        %1332 = vmatprep.subr.mxu0 %v1257
        %1333 = vmatpush1.msra.mxu0 %v1256
        %1334 = vmatprep.subr.mxu0 %v1259
        %1335 = vmatpush1.msra.mxu0 %v1258
        %1336 = vmatprep.subr.mxu0 %v1261
        %1337 = vmatpush1.msra.mxu0 %v1260
        %1338 = vmatprep.subr.mxu0 %v1263
        %1339 = vmatpush1.msra.mxu0 %v1262
        %1340 = vmatprep.subr.mxu0 %v1265
        %1341 = vmatpush1.msra.mxu0 %v1264
        %1342 = vmatprep.subr.mxu0 %v1267
        %1343 = vmatpush1.msra.mxu0 %v1266
        %1344 = vmatprep.subr.mxu0 %v1269
        %1345 = vmatpush1.msra.mxu0 %v1268
        %1346 = vmatprep.subr.mxu0 %v1271
        %1347 = vmatpush1.msra.mxu0 %v1270
        %1348 = vmatprep.subr.mxu0 %v1273
        %1349 = vmatpush1.msra.mxu0 %v1272
        %1350 = vmatprep.subr.mxu0 %v1275
        %1351 = vmatpush1.msra.mxu0 %v1274
        %1352 = vmatprep.subr.mxu0 %v1277
        %1353 = vmatpush1.msra.mxu0 %v1276
        %1354 = vmatprep.subr.mxu0 %v1279
        %1355 = vmatpush1.msra.mxu0 %v1278
        %1356 = vmatprep.subr.mxu0 %v1281
        %1357 = vmatpush1.msra.mxu0 %v1280
        %1358 = vmatprep.subr.mxu0 %v1283
        %1359 = vmatpush1.msra.mxu0 %v1282
        %1360 = vmatprep.subr.mxu0 %v1285
        %1361 = vmatpush1.msra.mxu0 %v1284
        %1362 = vmatprep.subr.mxu0 %v1287
        %1363 = vmatpush1.msra.mxu0 %v1286
        %1364 = vmatprep.subr.mxu0 %v1289
        %1365 = vmatpush1.msra.mxu0 %v1288
        %1366 = vmatprep.subr.mxu0 %v1291
        %1367 = vmatpush1.msra.mxu0 %v1290
        %1368 = vmatprep.mubr.f32.mxu0 %v1220
        %1369 = vmatmul.mubr.f32.gmra.mrb[0].mxu0 %v1139
        %v1370 = vpop.f32.mrb[0].mxu0
        %v1371 = vadd.f32 %v1297, %v1370
        %v1372 = vpop.f32.mrb[0].mxu0
        %v1373 = vadd.f32 %v1301, %v1372
        %1374 = vmatprep.mubr.f32.mxu0 %v1225
        %1375 = vmatmul.mubr.f32.gmra.mrb[0].mxu0 %v1144
        %v1376 = vpop.f32.mrb[0].mxu0
        %v1377 = vadd.f32 %v1297, %v1376
        %v1378 = vpop.f32.mrb[0].mxu0
        %v1379 = vadd.f32 %v1301, %v1378
        %1380 = vdwg.mxu0
        %1381 = vst [vmem:[%s352] sm:$0xff] %v1371
        %1382 = vst [vmem:[%s352 + $0x8] sm:$0xff] %v1373
        %1383 = vst [vmem:[%s352 + $0x10] sm:$0xff] %v1377
        %1384 = vst [vmem:[%s352 + $0x18] sm:$0xff] %v1379
        %s1385 = sand.u32 %s186, 1
        %s1386 = scalar_lea.sflag [#allocation4], %s1385
        %s1387 = sand.u32 %s186, 1
        %s1388 = smul.addr %s1387, 32
        %s1389 = scalar_lea.vmem [#allocation11], %s1388
        // Predicated region
        $region69: #{tpu_custom_call.1} parent=47 // pred_check
          %p1390 = pneg %p196
        $region70: #{tpu_custom_call.1} parent=47 // pred_check_branch
          %1392 = sbr.rel (%p1390) target = $region72
        $region71: #{tpu_custom_call.1} parent=47 // pred_region
          %s1394 = ssub.s32 512, 512
          %1395 = vsyncadd %s1386, %s1394
          %s1396 = smul.addr %s26, 4
          %s1397 = smul.addr %s1396, 128
          %s1398 = scalar_lea.hbm %s7, %s1397
          %s1399 = sshll.u32 %s1389, 4
          %s1400 = int_to_ptr.vmem [resolvable:$true] %s1399
          %1405 = dma.vmem_to_hbm [thread:$0]  %s1400, 512, %s1398, %s1386, 256, 256, 16
        $region72: #{tpu_custom_call.1} parent=47 // pred_fallthru
          _
      $region48: #{tpu_custom_call.1} parent=5 // pred_fallthru
        _
      %p1406 = scmp.le.s32.totalorder 2, %s21
      // Predicated region
      $region73: #{tpu_custom_call.1} parent=5 // pred_check
        %p1407 = pneg %p1406
      $region74: #{tpu_custom_call.1} parent=5 // pred_check_branch
        %1409 = sbr.rel (%p1407) target = $region76
      $region75: #{tpu_custom_call.1} parent=5 // pred_region
        %s1410 = ssub.s32 %s21, 2
        // Predicated region
        $region77: #{tpu_custom_call.1} parent=75 // pred_check
          %p1411 = pneg %p202
        $region78: #{tpu_custom_call.1} parent=75 // pred_check_branch
          %1413 = sbr.rel (%p1411) target = $region80
        $region79: #{tpu_custom_call.1} parent=75 // pred_region
          %s1414 = sand.u32 %s187, 1
          %s1415 = scalar_lea.sflag [#allocation4], %s1414
          %s1416 = sand.u32 %s187, 1
          %s1417 = smul.addr %s1416, 32
          %s1418 = scalar_lea.vmem [#allocation11], %s1417
          %1419 = dma.done %s1415, 512
        $region80: #{tpu_custom_call.1} parent=75 // pred_fallthru
          _
      $region76: #{tpu_custom_call.1} parent=5 // pred_fallthru
        _
    $region6: #{tpu_custom_call.1} parent=1 // loop_footer
      %s25 = sadd.s32 1, %s21
    $region7: #{tpu_custom_call.1} parent=1 // loop_footer_branch
      %20 = sbr.rel target = $region3
    $region8: #{tpu_custom_call.1} parent=1 // loop_exit
      _
    %1420 = vsyncpa [#allocation3], 1
    %s1421 = scalar_lea.sflag [#allocation3], 1
    %1422 = vsyncpa %s1421, 1
    %1423 = vsyncpa [#allocation6], 1
    %1424 = vsyncpa [#allocation9], 1
    %1425 = vsyncpa [#allocation4], 1
    %s1426 = scalar_lea.sflag [#allocation4], 1
    %1427 = vsyncpa %s1426, 1

</llo_original>
